<compile_context>
chip_gen: v7x
topology: tpu7x:2x2x1
jax: 0.10.0
libtpu: 0.0.40
codegen_flags: <defaults>
</compile_context>

<pallas_src>
import jax
import jax.numpy as jnp
from jax import lax
from jax.experimental import pallas as pl
from jax.experimental.pallas import tpu as pltpu

INPUT_SIZE = 5
HIDDEN = 128
OUTPUT_SIZE = 5
SEQ_LEN = 8
OUT_PAD = 8   # output dim padded only to one sublane-ish group; single masked vst


def lstm_kernel(x_ref, wih_ref, b_ref, whh_ref, wout_ref, bout_ref, out_ref):
    """Full LSTM recurrence + final linear for one sequence (batch = 1).

    x_ref    : (SEQ_LEN, INPUT_SIZE)   f32   raw inputs (no padding)
    wih_ref  : (INPUT_SIZE, 4*HIDDEN)  f32   W_ih^T
    b_ref    : (1, 4*HIDDEN)           f32   b_ih + b_hh
    whh_ref  : (HIDDEN, 4*HIDDEN)      bf16  W_hh^T
    wout_ref : (HIDDEN, OUT_PAD)       f32   W_out^T (zero-padded cols)
    bout_ref : (1, OUT_PAD)            f32   b_out (zero-padded)
    out_ref  : (1, OUT_PAD)            f32   final prediction (padded)
    """
    H = HIDDEN
    mm_dtype = whh_ref.dtype

    # --- Hoisted input projection: one (8, 5) x (5, 512) matmul, bias folded in. ---
    pre_gates = (jnp.dot(x_ref[...], wih_ref[...],
                         preferred_element_type=jnp.float32)
                 + b_ref[...])                                   # (SEQ_LEN, 4H) f32

    h = jnp.zeros((1, H), jnp.float32)
    c = jnp.zeros((1, H), jnp.float32)

    # --- Fully-unrolled serial recurrence: only h@W_hh + activations per step. ---
    for t in range(SEQ_LEN):
        gates = (pre_gates[t:t + 1, :]
                 + jnp.dot(h.astype(mm_dtype), whh_ref[...],
                           preferred_element_type=jnp.float32))  # (1, 4H) f32
        # PyTorch gate order: input, forget, cell(g), output
        i = jax.nn.sigmoid(gates[:, 0:H])
        f = jax.nn.sigmoid(gates[:, H:2 * H])
        g = jnp.tanh(gates[:, 2 * H:3 * H])
        o = jax.nn.sigmoid(gates[:, 3 * H:4 * H])
        c = f * c + i * g
        h = o * jnp.tanh(c)

    # Dropout(p=0.8) is identity in eval/inference mode.
    out_ref[...] = (jnp.dot(h, wout_ref[...],
                            preferred_element_type=jnp.float32)
                    + bout_ref[...])


def prepare_params(params):
    """One-time layout prep: transpose + (tiny) pad weights into kernel layouts."""
    w_ih, w_hh, b_ih, b_hh, w_out, b_out = params
    wih_t = w_ih.T.astype(jnp.float32)                              # (5, 4H)
    b = (b_ih + b_hh).reshape(1, 4 * HIDDEN).astype(jnp.float32)    # (1, 4H)
    whh_t = w_hh.T.astype(jnp.bfloat16)                             # (H, 4H) bf16
    wout_t = jnp.zeros((HIDDEN, OUT_PAD), jnp.float32).at[:, :OUTPUT_SIZE].set(w_out.T)
    bout = jnp.zeros((1, OUT_PAD), jnp.float32).at[0, :OUTPUT_SIZE].set(b_out)
    return (wih_t, b, whh_t, wout_t, bout)


def _lstm_forward_impl(x, prepared):
    """x: (SEQ_LEN, INPUT_SIZE) f32. Returns (OUTPUT_SIZE,) = predictions[-1]."""
    wih_t, b, whh_t, wout_t, bout = prepared

    vmem = pl.BlockSpec(memory_space=pltpu.MemorySpace.VMEM)
    out = pl.pallas_call(
        lstm_kernel,
        out_shape=jax.ShapeDtypeStruct((1, OUT_PAD), jnp.float32),
        in_specs=[vmem] * 6,
        out_specs=vmem,
    )(x, wih_t, b, whh_t, wout_t, bout)
    return out[0, :OUTPUT_SIZE]


lstm_forward = jax.jit(_lstm_forward_impl)


def lstm_reference(x, params):
    """Pure-JAX f32 reference of the same forward pass (eval-mode dropout)."""
    w_ih, w_hh, b_ih, b_hh, w_out, b_out = params
    H = HIDDEN

    def step(carry, x_t):
        h, c = carry
        gates = x_t @ w_ih.T + h @ w_hh.T + b_ih + b_hh
        i = jax.nn.sigmoid(gates[0:H])
        f = jax.nn.sigmoid(gates[H:2 * H])
        g = jnp.tanh(gates[2 * H:3 * H])
        o = jax.nn.sigmoid(gates[3 * H:4 * H])
        c_new = f * c + i * g
        h_new = o * jnp.tanh(c_new)
        return (h_new, c_new), h_new

    h0 = jnp.zeros((H,), jnp.float32)
    c0 = jnp.zeros((H,), jnp.float32)
    (_, _), hs = lax.scan(step, (h0, c0), x)
    preds = hs @ w_out.T + b_out
    return preds[-1]


def init_params(key):
    """Deterministic init matching PyTorch default U(-1/sqrt(H), 1/sqrt(H))."""
    k = 1.0 / jnp.sqrt(jnp.float32(HIDDEN))
    keys = jax.random.split(key, 6)
    w_ih = jax.random.uniform(keys[0], (4 * HIDDEN, INPUT_SIZE), jnp.float32, -k, k)
    w_hh = jax.random.uniform(keys[1], (4 * HIDDEN, HIDDEN), jnp.float32, -k, k)
    b_ih = jax.random.uniform(keys[2], (4 * HIDDEN,), jnp.float32, -k, k)
    b_hh = jax.random.uniform(keys[3], (4 * HIDDEN,), jnp.float32, -k, k)
    w_out = jax.random.uniform(keys[4], (OUTPUT_SIZE, HIDDEN), jnp.float32, -k, k)
    b_out = jax.random.uniform(keys[5], (OUTPUT_SIZE,), jnp.float32, -k, k)
    return (w_ih, w_hh, b_ih, b_hh, w_out, b_out)


if __name__ == "__main__":
    key = jax.random.PRNGKey(0)
    pkey, xkey = jax.random.split(key)
    params = init_params(pkey)
    x = jax.random.normal(xkey, (SEQ_LEN, INPUT_SIZE), jnp.float32)

    prepared = prepare_params(params)   # one-time layout prep (bf16 W_hh, padded W_out)

    pred = lstm_forward(x, prepared)
    pred = jax.block_until_ready(pred)

    ref = lstm_reference(x, params)
    # bf16 W_hh / h operands in the recurrent path vs f32 reference.
    atol, rtol = 2e-2, 2e-2
    assert pred.shape == (OUTPUT_SIZE,)
    assert jnp.allclose(pred, ref, atol=atol, rtol=rtol), (pred, ref)
    print("KERNEL_OK")
</pallas_src>

<mosaic_0001>
module attributes {stable_mosaic.version = 11 : i64} {
  func.func @lstm_kernel(%arg0: memref<8x5xf32, #tpu.memory_space<vmem>>, %arg1: memref<5x512xf32, #tpu.memory_space<vmem>>, %arg2: memref<1x512xf32, #tpu.memory_space<vmem>>, %arg3: memref<128x512xbf16, #tpu.memory_space<vmem>>, %arg4: memref<128x8xf32, #tpu.memory_space<vmem>>, %arg5: memref<1x8xf32, #tpu.memory_space<vmem>>, %arg6: memref<1x8xf32, #tpu.memory_space<vmem>>) attributes {dimension_semantics = [], scalar_prefetch = 0 : i64, scratch_operands = 0 : i64, tpu.core_type = #tpu.core_type<tc>} {
    %c0 = arith.constant 0 : index
    %c0_0 = arith.constant 0 : index
    %0 = vector.load %arg0[%c0, %c0_0] : memref<8x5xf32, #tpu.memory_space<vmem>>, vector<8x5xf32>
    %c0_1 = arith.constant 0 : index
    %c0_2 = arith.constant 0 : index
    %1 = vector.load %arg1[%c0_1, %c0_2] : memref<5x512xf32, #tpu.memory_space<vmem>>, vector<5x512xf32>
    %cst = arith.constant dense<0.000000e+00> : vector<8x512xf32>
    %2 = tpu.matmul %0, %1, %cst {dimension_numbers = #tpu.dot_dimension_numbers<[1], [0], [0], [1], [0, 0, 1, 1], [], []>} : vector<8x5xf32>, vector<5x512xf32>, vector<8x512xf32> -> vector<8x512xf32>
    %c0_3 = arith.constant 0 : index
    %c0_4 = arith.constant 0 : index
    %3 = vector.load %arg2[%c0_3, %c0_4] : memref<1x512xf32, #tpu.memory_space<vmem>>, vector<1x512xf32>
    %4 = vector.broadcast %3 : vector<1x512xf32> to vector<8x512xf32>
    %5 = arith.addf %2, %4 : vector<8x512xf32>
    %cst_5 = arith.constant 0.000000e+00 : f32
    %6 = vector.broadcast %cst_5 : f32 to vector<1x128xf32>
    %cst_6 = arith.constant 0.000000e+00 : f32
    %7 = vector.broadcast %cst_6 : f32 to vector<1x128xf32>
    %8 = vector.extract_strided_slice %5 {offsets = [0, 0], sizes = [1, 512], strides = [1, 1]} : vector<8x512xf32> to vector<1x512xf32>
    %9 = arith.truncf %6 : vector<1x128xf32> to vector<1x128xbf16>
    %c0_7 = arith.constant 0 : index
    %c0_8 = arith.constant 0 : index
    %10 = vector.load %arg3[%c0_7, %c0_8] : memref<128x512xbf16, #tpu.memory_space<vmem>>, vector<128x512xbf16>
    %cst_9 = arith.constant dense<0.000000e+00> : vector<1x512xf32>
    %11 = tpu.matmul %9, %10, %cst_9 {dimension_numbers = #tpu.dot_dimension_numbers<[1], [0], [0], [1], [0, 0, 1, 1], [], []>} : vector<1x128xbf16>, vector<128x512xbf16>, vector<1x512xf32> -> vector<1x512xf32>
    %12 = arith.addf %8, %11 : vector<1x512xf32>
    %13 = vector.extract_strided_slice %12 {offsets = [0, 0], sizes = [1, 128], strides = [1, 1]} : vector<1x512xf32> to vector<1x128xf32>
    %14 = arith.negf %13 : vector<1x128xf32>
    %15 = math.exp %14 : vector<1x128xf32>
    %cst_10 = arith.constant 1.000000e+00 : f32
    %16 = vector.broadcast %cst_10 : f32 to vector<1x128xf32>
    %17 = arith.addf %16, %15 : vector<1x128xf32>
    %18 = arith.divf %16, %17 : vector<1x128xf32>
    %19 = vector.extract_strided_slice %12 {offsets = [0, 128], sizes = [1, 128], strides = [1, 1]} : vector<1x512xf32> to vector<1x128xf32>
    %20 = arith.negf %19 : vector<1x128xf32>
    %21 = math.exp %20 : vector<1x128xf32>
    %cst_11 = arith.constant 1.000000e+00 : f32
    %22 = vector.broadcast %cst_11 : f32 to vector<1x128xf32>
    %23 = arith.addf %22, %21 : vector<1x128xf32>
    %24 = arith.divf %22, %23 : vector<1x128xf32>
    %25 = vector.extract_strided_slice %12 {offsets = [0, 256], sizes = [1, 128], strides = [1, 1]} : vector<1x512xf32> to vector<1x128xf32>
    %26 = math.tanh %25 : vector<1x128xf32>
    %27 = vector.extract_strided_slice %12 {offsets = [0, 384], sizes = [1, 128], strides = [1, 1]} : vector<1x512xf32> to vector<1x128xf32>
    %28 = arith.negf %27 : vector<1x128xf32>
    %29 = math.exp %28 : vector<1x128xf32>
    %cst_12 = arith.constant 1.000000e+00 : f32
    %30 = vector.broadcast %cst_12 : f32 to vector<1x128xf32>
    %31 = arith.addf %30, %29 : vector<1x128xf32>
    %32 = arith.divf %30, %31 : vector<1x128xf32>
    %33 = arith.mulf %24, %7 : vector<1x128xf32>
    %34 = arith.mulf %18, %26 : vector<1x128xf32>
    %35 = arith.addf %33, %34 : vector<1x128xf32>
    %36 = math.tanh %35 : vector<1x128xf32>
    %37 = arith.mulf %32, %36 : vector<1x128xf32>
    %38 = vector.extract_strided_slice %5 {offsets = [1, 0], sizes = [1, 512], strides = [1, 1]} : vector<8x512xf32> to vector<1x512xf32>
    %39 = arith.truncf %37 : vector<1x128xf32> to vector<1x128xbf16>
    %c0_13 = arith.constant 0 : index
    %c0_14 = arith.constant 0 : index
    %40 = vector.load %arg3[%c0_13, %c0_14] : memref<128x512xbf16, #tpu.memory_space<vmem>>, vector<128x512xbf16>
    %cst_15 = arith.constant dense<0.000000e+00> : vector<1x512xf32>
    %41 = tpu.matmul %39, %40, %cst_15 {dimension_numbers = #tpu.dot_dimension_numbers<[1], [0], [0], [1], [0, 0, 1, 1], [], []>} : vector<1x128xbf16>, vector<128x512xbf16>, vector<1x512xf32> -> vector<1x512xf32>
    %42 = arith.addf %38, %41 : vector<1x512xf32>
    %43 = vector.extract_strided_slice %42 {offsets = [0, 0], sizes = [1, 128], strides = [1, 1]} : vector<1x512xf32> to vector<1x128xf32>
    %44 = arith.negf %43 : vector<1x128xf32>
    %45 = math.exp %44 : vector<1x128xf32>
    %cst_16 = arith.constant 1.000000e+00 : f32
    %46 = vector.broadcast %cst_16 : f32 to vector<1x128xf32>
    %47 = arith.addf %46, %45 : vector<1x128xf32>
    %48 = arith.divf %46, %47 : vector<1x128xf32>
    %49 = vector.extract_strided_slice %42 {offsets = [0, 128], sizes = [1, 128], strides = [1, 1]} : vector<1x512xf32> to vector<1x128xf32>
    %50 = arith.negf %49 : vector<1x128xf32>
    %51 = math.exp %50 : vector<1x128xf32>
    %cst_17 = arith.constant 1.000000e+00 : f32
    %52 = vector.broadcast %cst_17 : f32 to vector<1x128xf32>
    %53 = arith.addf %52, %51 : vector<1x128xf32>
    %54 = arith.divf %52, %53 : vector<1x128xf32>
    %55 = vector.extract_strided_slice %42 {offsets = [0, 256], sizes = [1, 128], strides = [1, 1]} : vector<1x512xf32> to vector<1x128xf32>
    %56 = math.tanh %55 : vector<1x128xf32>
    %57 = vector.extract_strided_slice %42 {offsets = [0, 384], sizes = [1, 128], strides = [1, 1]} : vector<1x512xf32> to vector<1x128xf32>
    %58 = arith.negf %57 : vector<1x128xf32>
    %59 = math.exp %58 : vector<1x128xf32>
    %cst_18 = arith.constant 1.000000e+00 : f32
    %60 = vector.broadcast %cst_18 : f32 to vector<1x128xf32>
    %61 = arith.addf %60, %59 : vector<1x128xf32>
    %62 = arith.divf %60, %61 : vector<1x128xf32>
    %63 = arith.mulf %54, %35 : vector<1x128xf32>
    %64 = arith.mulf %48, %56 : vector<1x128xf32>
    %65 = arith.addf %63, %64 : vector<1x128xf32>
    %66 = math.tanh %65 : vector<1x128xf32>
    %67 = arith.mulf %62, %66 : vector<1x128xf32>
    %68 = vector.extract_strided_slice %5 {offsets = [2, 0], sizes = [1, 512], strides = [1, 1]} : vector<8x512xf32> to vector<1x512xf32>
    %69 = arith.truncf %67 : vector<1x128xf32> to vector<1x128xbf16>
    %c0_19 = arith.constant 0 : index
    %c0_20 = arith.constant 0 : index
    %70 = vector.load %arg3[%c0_19, %c0_20] : memref<128x512xbf16, #tpu.memory_space<vmem>>, vector<128x512xbf16>
    %cst_21 = arith.constant dense<0.000000e+00> : vector<1x512xf32>
    %71 = tpu.matmul %69, %70, %cst_21 {dimension_numbers = #tpu.dot_dimension_numbers<[1], [0], [0], [1], [0, 0, 1, 1], [], []>} : vector<1x128xbf16>, vector<128x512xbf16>, vector<1x512xf32> -> vector<1x512xf32>
    %72 = arith.addf %68, %71 : vector<1x512xf32>
    %73 = vector.extract_strided_slice %72 {offsets = [0, 0], sizes = [1, 128], strides = [1, 1]} : vector<1x512xf32> to vector<1x128xf32>
    %74 = arith.negf %73 : vector<1x128xf32>
    %75 = math.exp %74 : vector<1x128xf32>
    %cst_22 = arith.constant 1.000000e+00 : f32
    %76 = vector.broadcast %cst_22 : f32 to vector<1x128xf32>
    %77 = arith.addf %76, %75 : vector<1x128xf32>
    %78 = arith.divf %76, %77 : vector<1x128xf32>
    %79 = vector.extract_strided_slice %72 {offsets = [0, 128], sizes = [1, 128], strides = [1, 1]} : vector<1x512xf32> to vector<1x128xf32>
    %80 = arith.negf %79 : vector<1x128xf32>
    %81 = math.exp %80 : vector<1x128xf32>
    %cst_23 = arith.constant 1.000000e+00 : f32
    %82 = vector.broadcast %cst_23 : f32 to vector<1x128xf32>
    %83 = arith.addf %82, %81 : vector<1x128xf32>
    %84 = arith.divf %82, %83 : vector<1x128xf32>
    %85 = vector.extract_strided_slice %72 {offsets = [0, 256], sizes = [1, 128], strides = [1, 1]} : vector<1x512xf32> to vector<1x128xf32>
    %86 = math.tanh %85 : vector<1x128xf32>
    %87 = vector.extract_strided_slice %72 {offsets = [0, 384], sizes = [1, 128], strides = [1, 1]} : vector<1x512xf32> to vector<1x128xf32>
    %88 = arith.negf %87 : vector<1x128xf32>
    %89 = math.exp %88 : vector<1x128xf32>
    %cst_24 = arith.constant 1.000000e+00 : f32
    %90 = vector.broadcast %cst_24 : f32 to vector<1x128xf32>
    %91 = arith.addf %90, %89 : vector<1x128xf32>
    %92 = arith.divf %90, %91 : vector<1x128xf32>
    %93 = arith.mulf %84, %65 : vector<1x128xf32>
    %94 = arith.mulf %78, %86 : vector<1x128xf32>
    %95 = arith.addf %93, %94 : vector<1x128xf32>
    %96 = math.tanh %95 : vector<1x128xf32>
    %97 = arith.mulf %92, %96 : vector<1x128xf32>
    %98 = vector.extract_strided_slice %5 {offsets = [3, 0], sizes = [1, 512], strides = [1, 1]} : vector<8x512xf32> to vector<1x512xf32>
    %99 = arith.truncf %97 : vector<1x128xf32> to vector<1x128xbf16>
    %c0_25 = arith.constant 0 : index
    %c0_26 = arith.constant 0 : index
    %100 = vector.load %arg3[%c0_25, %c0_26] : memref<128x512xbf16, #tpu.memory_space<vmem>>, vector<128x512xbf16>
    %cst_27 = arith.constant dense<0.000000e+00> : vector<1x512xf32>
    %101 = tpu.matmul %99, %100, %cst_27 {dimension_numbers = #tpu.dot_dimension_numbers<[1], [0], [0], [1], [0, 0, 1, 1], [], []>} : vector<1x128xbf16>, vector<128x512xbf16>, vector<1x512xf32> -> vector<1x512xf32>
    %102 = arith.addf %98, %101 : vector<1x512xf32>
    %103 = vector.extract_strided_slice %102 {offsets = [0, 0], sizes = [1, 128], strides = [1, 1]} : vector<1x512xf32> to vector<1x128xf32>
    %104 = arith.negf %103 : vector<1x128xf32>
    %105 = math.exp %104 : vector<1x128xf32>
    %cst_28 = arith.constant 1.000000e+00 : f32
    %106 = vector.broadcast %cst_28 : f32 to vector<1x128xf32>
    %107 = arith.addf %106, %105 : vector<1x128xf32>
    %108 = arith.divf %106, %107 : vector<1x128xf32>
    %109 = vector.extract_strided_slice %102 {offsets = [0, 128], sizes = [1, 128], strides = [1, 1]} : vector<1x512xf32> to vector<1x128xf32>
    %110 = arith.negf %109 : vector<1x128xf32>
    %111 = math.exp %110 : vector<1x128xf32>
    %cst_29 = arith.constant 1.000000e+00 : f32
    %112 = vector.broadcast %cst_29 : f32 to vector<1x128xf32>
    %113 = arith.addf %112, %111 : vector<1x128xf32>
    %114 = arith.divf %112, %113 : vector<1x128xf32>
    %115 = vector.extract_strided_slice %102 {offsets = [0, 256], sizes = [1, 128], strides = [1, 1]} : vector<1x512xf32> to vector<1x128xf32>
    %116 = math.tanh %115 : vector<1x128xf32>
    %117 = vector.extract_strided_slice %102 {offsets = [0, 384], sizes = [1, 128], strides = [1, 1]} : vector<1x512xf32> to vector<1x128xf32>
    %118 = arith.negf %117 : vector<1x128xf32>
    %119 = math.exp %118 : vector<1x128xf32>
    %cst_30 = arith.constant 1.000000e+00 : f32
    %120 = vector.broadcast %cst_30 : f32 to vector<1x128xf32>
    %121 = arith.addf %120, %119 : vector<1x128xf32>
    %122 = arith.divf %120, %121 : vector<1x128xf32>
    %123 = arith.mulf %114, %95 : vector<1x128xf32>
    %124 = arith.mulf %108, %116 : vector<1x128xf32>
    %125 = arith.addf %123, %124 : vector<1x128xf32>
    %126 = math.tanh %125 : vector<1x128xf32>
    %127 = arith.mulf %122, %126 : vector<1x128xf32>
    %128 = vector.extract_strided_slice %5 {offsets = [4, 0], sizes = [1, 512], strides = [1, 1]} : vector<8x512xf32> to vector<1x512xf32>
    %129 = arith.truncf %127 : vector<1x128xf32> to vector<1x128xbf16>
    %c0_31 = arith.constant 0 : index
    %c0_32 = arith.constant 0 : index
    %130 = vector.load %arg3[%c0_31, %c0_32] : memref<128x512xbf16, #tpu.memory_space<vmem>>, vector<128x512xbf16>
    %cst_33 = arith.constant dense<0.000000e+00> : vector<1x512xf32>
    %131 = tpu.matmul %129, %130, %cst_33 {dimension_numbers = #tpu.dot_dimension_numbers<[1], [0], [0], [1], [0, 0, 1, 1], [], []>} : vector<1x128xbf16>, vector<128x512xbf16>, vector<1x512xf32> -> vector<1x512xf32>
    %132 = arith.addf %128, %131 : vector<1x512xf32>
    %133 = vector.extract_strided_slice %132 {offsets = [0, 0], sizes = [1, 128], strides = [1, 1]} : vector<1x512xf32> to vector<1x128xf32>
    %134 = arith.negf %133 : vector<1x128xf32>
    %135 = math.exp %134 : vector<1x128xf32>
    %cst_34 = arith.constant 1.000000e+00 : f32
    %136 = vector.broadcast %cst_34 : f32 to vector<1x128xf32>
    %137 = arith.addf %136, %135 : vector<1x128xf32>
    %138 = arith.divf %136, %137 : vector<1x128xf32>
    %139 = vector.extract_strided_slice %132 {offsets = [0, 128], sizes = [1, 128], strides = [1, 1]} : vector<1x512xf32> to vector<1x128xf32>
    %140 = arith.negf %139 : vector<1x128xf32>
    %141 = math.exp %140 : vector<1x128xf32>
    %cst_35 = arith.constant 1.000000e+00 : f32
    %142 = vector.broadcast %cst_35 : f32 to vector<1x128xf32>
    %143 = arith.addf %142, %141 : vector<1x128xf32>
    %144 = arith.divf %142, %143 : vector<1x128xf32>
    %145 = vector.extract_strided_slice %132 {offsets = [0, 256], sizes = [1, 128], strides = [1, 1]} : vector<1x512xf32> to vector<1x128xf32>
    %146 = math.tanh %145 : vector<1x128xf32>
    %147 = vector.extract_strided_slice %132 {offsets = [0, 384], sizes = [1, 128], strides = [1, 1]} : vector<1x512xf32> to vector<1x128xf32>
    %148 = arith.negf %147 : vector<1x128xf32>
    %149 = math.exp %148 : vector<1x128xf32>
    %cst_36 = arith.constant 1.000000e+00 : f32
    %150 = vector.broadcast %cst_36 : f32 to vector<1x128xf32>
    %151 = arith.addf %150, %149 : vector<1x128xf32>
    %152 = arith.divf %150, %151 : vector<1x128xf32>
    %153 = arith.mulf %144, %125 : vector<1x128xf32>
    %154 = arith.mulf %138, %146 : vector<1x128xf32>
    %155 = arith.addf %153, %154 : vector<1x128xf32>
    %156 = math.tanh %155 : vector<1x128xf32>
    %157 = arith.mulf %152, %156 : vector<1x128xf32>
    %158 = vector.extract_strided_slice %5 {offsets = [5, 0], sizes = [1, 512], strides = [1, 1]} : vector<8x512xf32> to vector<1x512xf32>
    %159 = arith.truncf %157 : vector<1x128xf32> to vector<1x128xbf16>
    %c0_37 = arith.constant 0 : index
    %c0_38 = arith.constant 0 : index
    %160 = vector.load %arg3[%c0_37, %c0_38] : memref<128x512xbf16, #tpu.memory_space<vmem>>, vector<128x512xbf16>
    %cst_39 = arith.constant dense<0.000000e+00> : vector<1x512xf32>
    %161 = tpu.matmul %159, %160, %cst_39 {dimension_numbers = #tpu.dot_dimension_numbers<[1], [0], [0], [1], [0, 0, 1, 1], [], []>} : vector<1x128xbf16>, vector<128x512xbf16>, vector<1x512xf32> -> vector<1x512xf32>
    %162 = arith.addf %158, %161 : vector<1x512xf32>
    %163 = vector.extract_strided_slice %162 {offsets = [0, 0], sizes = [1, 128], strides = [1, 1]} : vector<1x512xf32> to vector<1x128xf32>
    %164 = arith.negf %163 : vector<1x128xf32>
    %165 = math.exp %164 : vector<1x128xf32>
    %cst_40 = arith.constant 1.000000e+00 : f32
    %166 = vector.broadcast %cst_40 : f32 to vector<1x128xf32>
    %167 = arith.addf %166, %165 : vector<1x128xf32>
    %168 = arith.divf %166, %167 : vector<1x128xf32>
    %169 = vector.extract_strided_slice %162 {offsets = [0, 128], sizes = [1, 128], strides = [1, 1]} : vector<1x512xf32> to vector<1x128xf32>
    %170 = arith.negf %169 : vector<1x128xf32>
    %171 = math.exp %170 : vector<1x128xf32>
    %cst_41 = arith.constant 1.000000e+00 : f32
    %172 = vector.broadcast %cst_41 : f32 to vector<1x128xf32>
    %173 = arith.addf %172, %171 : vector<1x128xf32>
    %174 = arith.divf %172, %173 : vector<1x128xf32>
    %175 = vector.extract_strided_slice %162 {offsets = [0, 256], sizes = [1, 128], strides = [1, 1]} : vector<1x512xf32> to vector<1x128xf32>
    %176 = math.tanh %175 : vector<1x128xf32>
    %177 = vector.extract_strided_slice %162 {offsets = [0, 384], sizes = [1, 128], strides = [1, 1]} : vector<1x512xf32> to vector<1x128xf32>
    %178 = arith.negf %177 : vector<1x128xf32>
    %179 = math.exp %178 : vector<1x128xf32>
    %cst_42 = arith.constant 1.000000e+00 : f32
    %180 = vector.broadcast %cst_42 : f32 to vector<1x128xf32>
    %181 = arith.addf %180, %179 : vector<1x128xf32>
    %182 = arith.divf %180, %181 : vector<1x128xf32>
    %183 = arith.mulf %174, %155 : vector<1x128xf32>
    %184 = arith.mulf %168, %176 : vector<1x128xf32>
    %185 = arith.addf %183, %184 : vector<1x128xf32>
    %186 = math.tanh %185 : vector<1x128xf32>
    %187 = arith.mulf %182, %186 : vector<1x128xf32>
    %188 = vector.extract_strided_slice %5 {offsets = [6, 0], sizes = [1, 512], strides = [1, 1]} : vector<8x512xf32> to vector<1x512xf32>
    %189 = arith.truncf %187 : vector<1x128xf32> to vector<1x128xbf16>
    %c0_43 = arith.constant 0 : index
    %c0_44 = arith.constant 0 : index
    %190 = vector.load %arg3[%c0_43, %c0_44] : memref<128x512xbf16, #tpu.memory_space<vmem>>, vector<128x512xbf16>
    %cst_45 = arith.constant dense<0.000000e+00> : vector<1x512xf32>
    %191 = tpu.matmul %189, %190, %cst_45 {dimension_numbers = #tpu.dot_dimension_numbers<[1], [0], [0], [1], [0, 0, 1, 1], [], []>} : vector<1x128xbf16>, vector<128x512xbf16>, vector<1x512xf32> -> vector<1x512xf32>
    %192 = arith.addf %188, %191 : vector<1x512xf32>
    %193 = vector.extract_strided_slice %192 {offsets = [0, 0], sizes = [1, 128], strides = [1, 1]} : vector<1x512xf32> to vector<1x128xf32>
    %194 = arith.negf %193 : vector<1x128xf32>
    %195 = math.exp %194 : vector<1x128xf32>
    %cst_46 = arith.constant 1.000000e+00 : f32
    %196 = vector.broadcast %cst_46 : f32 to vector<1x128xf32>
    %197 = arith.addf %196, %195 : vector<1x128xf32>
    %198 = arith.divf %196, %197 : vector<1x128xf32>
    %199 = vector.extract_strided_slice %192 {offsets = [0, 128], sizes = [1, 128], strides = [1, 1]} : vector<1x512xf32> to vector<1x128xf32>
    %200 = arith.negf %199 : vector<1x128xf32>
    %201 = math.exp %200 : vector<1x128xf32>
    %cst_47 = arith.constant 1.000000e+00 : f32
    %202 = vector.broadcast %cst_47 : f32 to vector<1x128xf32>
    %203 = arith.addf %202, %201 : vector<1x128xf32>
    %204 = arith.divf %202, %203 : vector<1x128xf32>
    %205 = vector.extract_strided_slice %192 {offsets = [0, 256], sizes = [1, 128], strides = [1, 1]} : vector<1x512xf32> to vector<1x128xf32>
    %206 = math.tanh %205 : vector<1x128xf32>
    %207 = vector.extract_strided_slice %192 {offsets = [0, 384], sizes = [1, 128], strides = [1, 1]} : vector<1x512xf32> to vector<1x128xf32>
    %208 = arith.negf %207 : vector<1x128xf32>
    %209 = math.exp %208 : vector<1x128xf32>
    %cst_48 = arith.constant 1.000000e+00 : f32
    %210 = vector.broadcast %cst_48 : f32 to vector<1x128xf32>
    %211 = arith.addf %210, %209 : vector<1x128xf32>
    %212 = arith.divf %210, %211 : vector<1x128xf32>
    %213 = arith.mulf %204, %185 : vector<1x128xf32>
    %214 = arith.mulf %198, %206 : vector<1x128xf32>
    %215 = arith.addf %213, %214 : vector<1x128xf32>
    %216 = math.tanh %215 : vector<1x128xf32>
    %217 = arith.mulf %212, %216 : vector<1x128xf32>
    %218 = vector.extract_strided_slice %5 {offsets = [7, 0], sizes = [1, 512], strides = [1, 1]} : vector<8x512xf32> to vector<1x512xf32>
    %219 = arith.truncf %217 : vector<1x128xf32> to vector<1x128xbf16>
    %c0_49 = arith.constant 0 : index
    %c0_50 = arith.constant 0 : index
    %220 = vector.load %arg3[%c0_49, %c0_50] : memref<128x512xbf16, #tpu.memory_space<vmem>>, vector<128x512xbf16>
    %cst_51 = arith.constant dense<0.000000e+00> : vector<1x512xf32>
    %221 = tpu.matmul %219, %220, %cst_51 {dimension_numbers = #tpu.dot_dimension_numbers<[1], [0], [0], [1], [0, 0, 1, 1], [], []>} : vector<1x128xbf16>, vector<128x512xbf16>, vector<1x512xf32> -> vector<1x512xf32>
    %222 = arith.addf %218, %221 : vector<1x512xf32>
    %223 = vector.extract_strided_slice %222 {offsets = [0, 0], sizes = [1, 128], strides = [1, 1]} : vector<1x512xf32> to vector<1x128xf32>
    %224 = arith.negf %223 : vector<1x128xf32>
    %225 = math.exp %224 : vector<1x128xf32>
    %cst_52 = arith.constant 1.000000e+00 : f32
    %226 = vector.broadcast %cst_52 : f32 to vector<1x128xf32>
    %227 = arith.addf %226, %225 : vector<1x128xf32>
    %228 = arith.divf %226, %227 : vector<1x128xf32>
    %229 = vector.extract_strided_slice %222 {offsets = [0, 128], sizes = [1, 128], strides = [1, 1]} : vector<1x512xf32> to vector<1x128xf32>
    %230 = arith.negf %229 : vector<1x128xf32>
    %231 = math.exp %230 : vector<1x128xf32>
    %cst_53 = arith.constant 1.000000e+00 : f32
    %232 = vector.broadcast %cst_53 : f32 to vector<1x128xf32>
    %233 = arith.addf %232, %231 : vector<1x128xf32>
    %234 = arith.divf %232, %233 : vector<1x128xf32>
    %235 = vector.extract_strided_slice %222 {offsets = [0, 256], sizes = [1, 128], strides = [1, 1]} : vector<1x512xf32> to vector<1x128xf32>
    %236 = math.tanh %235 : vector<1x128xf32>
    %237 = vector.extract_strided_slice %222 {offsets = [0, 384], sizes = [1, 128], strides = [1, 1]} : vector<1x512xf32> to vector<1x128xf32>
    %238 = arith.negf %237 : vector<1x128xf32>
    %239 = math.exp %238 : vector<1x128xf32>
    %cst_54 = arith.constant 1.000000e+00 : f32
    %240 = vector.broadcast %cst_54 : f32 to vector<1x128xf32>
    %241 = arith.addf %240, %239 : vector<1x128xf32>
    %242 = arith.divf %240, %241 : vector<1x128xf32>
    %243 = arith.mulf %234, %215 : vector<1x128xf32>
    %244 = arith.mulf %228, %236 : vector<1x128xf32>
    %245 = arith.addf %243, %244 : vector<1x128xf32>
    %246 = math.tanh %245 : vector<1x128xf32>
    %247 = arith.mulf %242, %246 : vector<1x128xf32>
    %c0_55 = arith.constant 0 : index
    %c0_56 = arith.constant 0 : index
    %248 = vector.load %arg4[%c0_55, %c0_56] : memref<128x8xf32, #tpu.memory_space<vmem>>, vector<128x8xf32>
    %cst_57 = arith.constant dense<0.000000e+00> : vector<1x8xf32>
    %249 = tpu.matmul %247, %248, %cst_57 {dimension_numbers = #tpu.dot_dimension_numbers<[1], [0], [0], [1], [0, 0, 1, 1], [], []>} : vector<1x128xf32>, vector<128x8xf32>, vector<1x8xf32> -> vector<1x8xf32>
    %c0_58 = arith.constant 0 : index
    %c0_59 = arith.constant 0 : index
    %250 = vector.load %arg5[%c0_58, %c0_59] : memref<1x8xf32, #tpu.memory_space<vmem>>, vector<1x8xf32>
    %251 = arith.addf %249, %250 : vector<1x8xf32>
    %c0_60 = arith.constant 0 : index
    %c0_61 = arith.constant 0 : index
    %252 = vector.load %arg6[%c0_60, %c0_61] : memref<1x8xf32, #tpu.memory_space<vmem>>, vector<1x8xf32>
    tpu.vector_store %arg6[%c0_60, %c0_61], %251 {strides = array<i32>} : memref<1x8xf32, #tpu.memory_space<vmem>>, vector<1x8xf32>,
    return
  }
}

</mosaic_0001>

<llo_original>
// kernel: _lstm_forward_impl.1
$region0: #{_lstm_forward_impl.1}
  #allocation0 [shape = 'u32[]', space=smem, size = 0x4, offset = 0x4, fixed_abs, tag = 'smem constant byte address 0x4 - core index']
  #allocation1 [shape = 'u32[144,128]{1,0:T(1,128)}', space=vmem, size = 0x12000, scoped, tag = 'internal scratch']
  %s0 = inlined_call_operand.vmem [shape: f32[8,5], index: 0, kind: input, shape index: {}]
  %s1 = inlined_call_operand.vmem [shape: f32[5,512], index: 1, kind: input, shape index: {}]
  %s2 = inlined_call_operand.vmem [shape: f32[1,512], index: 2, kind: input, shape index: {}]
  %s3 = inlined_call_operand.hbm [shape: bf16[128,512], index: 3, kind: input, shape index: {}]
  %s4 = inlined_call_operand.vmem [shape: f32[128,8], index: 4, kind: input, shape index: {}]
  %s5 = inlined_call_operand.vmem [shape: f32[1,8], index: 5, kind: input, shape index: {}]
  %s6 = inlined_call_operand.vmem [shape: f32[1,8], index: 6, kind: output, shape index: {}]
  %s7 = sld [smem:[#allocation0]]
  $region38: #{_lstm_forward_impl.1} parent=0
    _
  %s9 = ssub.s32 1, %s7
  %s10 = scalar_select 0, %s9, %s7
  $region1: #{_lstm_forward_impl.1} parent=0
    #allocation2 [shape = 'u8[131072]{0}', space=vmem, size = 0x20000, scoped, tag = 'input window, operand 3, single buffered']
    #allocation3 [shape = 's32[1]{0}', space=sflag, size = 0x4, scoped, tag = 'scoped memory for _lstm_forward_impl.1']
    %11 = vsyncpa [#allocation3], 0
    // Predicated region
    $region2: #{_lstm_forward_impl.1} parent=1 // pred_check
      _
    $region3: #{_lstm_forward_impl.1} parent=1 // pred_check_branch
      %13 = sbr.rel (0) target = $region5
    $region4: #{_lstm_forward_impl.1} parent=1 // pred_region
      _
    $region5: #{_lstm_forward_impl.1} parent=1 // pred_fallthru
      _
    // Predicated region
    $region6: #{_lstm_forward_impl.1} parent=1 // pred_check
      _
    $region7: #{_lstm_forward_impl.1} parent=1 // pred_check_branch
      %15 = sbr.rel (0) target = $region9
    $region8: #{_lstm_forward_impl.1} parent=1 // pred_region
      _
    $region9: #{_lstm_forward_impl.1} parent=1 // pred_fallthru
      _
    // Predicated region
    $region10: #{_lstm_forward_impl.1} parent=1 // pred_check
      _
    $region11: #{_lstm_forward_impl.1} parent=1 // pred_check_branch
      %17 = sbr.rel (0) target = $region13
    $region12: #{_lstm_forward_impl.1} parent=1 // pred_region
      _
    $region13: #{_lstm_forward_impl.1} parent=1 // pred_fallthru
      _
    // Predicated region
    $region14: #{_lstm_forward_impl.1} parent=1 // pred_check
      _
    $region15: #{_lstm_forward_impl.1} parent=1 // pred_check_branch
      %19 = sbr.rel (0) target = $region17
    $region16: #{_lstm_forward_impl.1} parent=1 // pred_region
      %s21 = ssub.s32 4096, 4096
      %22 = vsyncadd [#allocation3], %s21
      %s23 = sshll.u32 [#allocation2], 4
      %s24 = int_to_ptr.vmem [resolvable:$true] %s23
      %29 = dma.hbm_to_vmem [thread:$0]  %s3, 4096, %s24, [#allocation3], 256, 256, 16
    $region17: #{_lstm_forward_impl.1} parent=1 // pred_fallthru
      _
    // Predicated region
    $region18: #{_lstm_forward_impl.1} parent=1 // pred_check
      _
    $region19: #{_lstm_forward_impl.1} parent=1 // pred_check_branch
      %31 = sbr.rel (0) target = $region21
    $region20: #{_lstm_forward_impl.1} parent=1 // pred_region
      _
    $region21: #{_lstm_forward_impl.1} parent=1 // pred_fallthru
      _
    // Predicated region
    $region22: #{_lstm_forward_impl.1} parent=1 // pred_check
      _
    $region23: #{_lstm_forward_impl.1} parent=1 // pred_check_branch
      %33 = sbr.rel (0) target = $region25
    $region24: #{_lstm_forward_impl.1} parent=1 // pred_region
      _
    $region25: #{_lstm_forward_impl.1} parent=1 // pred_fallthru
      _
    // Predicated region
    $region26: #{_lstm_forward_impl.1} parent=1 // pred_check
      _
    $region27: #{_lstm_forward_impl.1} parent=1 // pred_check_branch
      %35 = sbr.rel (0) target = $region29
    $region28: #{_lstm_forward_impl.1} parent=1 // pred_region
      %36 = dma.done [#allocation3], 4096
    $region29: #{_lstm_forward_impl.1} parent=1 // pred_fallthru
      _
    %v38 = vld [vmem:[%s0] sm:$0xff]
    %v39 = vld [vmem:[%s1] sm:$0x1f]
    %v40 = vld [vmem:[%s1 + $0x8] sm:$0x1f]
    %v41 = vld [vmem:[%s1 + $0x10] sm:$0x1f]
    %v42 = vld [vmem:[%s1 + $0x18] sm:$0x1f]
    %v43 = vld [vmem:[%s2] sm:$0xf]
    %v45 = vlaneseq
    %v46 = vshrl.u32 %v45, 7
    %v47 = vsub.s32 0, %v46
    %v48 = vrot.slane %v43, %v47
    %v49 = vlaneseq
    %v50 = vshrl.u32 %v49, 7
    %v51 = vsub.s32 1, %v50
    %v52 = vrot.slane %v43, %v51
    %v53 = vlaneseq
    %v54 = vshrl.u32 %v53, 7
    %v55 = vsub.s32 2, %v54
    %v56 = vrot.slane %v43, %v55
    %v57 = vlaneseq
    %v58 = vshrl.u32 %v57, 7
    %v59 = vsub.s32 3, %v58
    %v60 = vrot.slane %v43, %v59
    %vm65 = vcmask 39936
    %v67 = vsel %vm65, %v38, 0
    %vm69 = vcmask 1044480
    %v71 = vsel %vm69, %v39, 0
    %v74 = vsel %vm69, %v40, 0
    %v77 = vsel %vm69, %v41, 0
    %v80 = vsel %vm69, %v42, 0
    %82 = vmatprep.subr.mxu0 %v74
    %83 = vmatpush1.msra.mxu0 %v71
    %84 = vmatprep.subr.mxu0 0.0
    %85 = vmatpush1.msra.mxu0 0.0
    %86 = vmatprep.subr.mxu0 0.0
    %87 = vmatpush1.msra.mxu0 0.0
    %88 = vmatprep.subr.mxu0 0.0
    %89 = vmatpush1.msra.mxu0 0.0
    %90 = vmatprep.subr.mxu0 0.0
    %91 = vmatpush1.msra.mxu0 0.0
    %92 = vmatprep.subr.mxu0 0.0
    %93 = vmatpush1.msra.mxu0 0.0
    %94 = vmatprep.subr.mxu0 0.0
    %95 = vmatpush1.msra.mxu0 0.0
    %96 = vmatprep.subr.mxu0 0.0
    %97 = vmatpush1.msra.mxu0 0.0
    %98 = vmatprep.subr.mxu0 0.0
    %99 = vmatpush1.msra.mxu0 0.0
    %100 = vmatprep.subr.mxu0 0.0
    %101 = vmatpush1.msra.mxu0 0.0
    %102 = vmatprep.subr.mxu0 0.0
    %103 = vmatpush1.msra.mxu0 0.0
    %104 = vmatprep.subr.mxu0 0.0
    %105 = vmatpush1.msra.mxu0 0.0
    %106 = vmatprep.subr.mxu0 0.0
    %107 = vmatpush1.msra.mxu0 0.0
    %108 = vmatprep.subr.mxu0 0.0
    %109 = vmatpush1.msra.mxu0 0.0
    %110 = vmatprep.subr.mxu0 0.0
    %111 = vmatpush1.msra.mxu0 0.0
    %112 = vmatprep.subr.mxu0 0.0
    %113 = vmatpush1.msra.mxu0 0.0
    %114 = vmatprep.subr.mxu0 0.0
    %115 = vmatpush1.msra.mxu0 0.0
    %116 = vmatprep.subr.mxu0 0.0
    %117 = vmatpush1.msra.mxu0 0.0
    %118 = vmatprep.subr.mxu0 0.0
    %119 = vmatpush1.msra.mxu0 0.0
    %120 = vmatprep.subr.mxu0 0.0
    %121 = vmatpush1.msra.mxu0 0.0
    %122 = vmatprep.subr.mxu0 0.0
    %123 = vmatpush1.msra.mxu0 0.0
    %124 = vmatprep.subr.mxu0 0.0
    %125 = vmatpush1.msra.mxu0 0.0
    %126 = vmatprep.subr.mxu0 0.0
    %127 = vmatpush1.msra.mxu0 0.0
    %128 = vmatprep.subr.mxu0 0.0
    %129 = vmatpush1.msra.mxu0 0.0
    %130 = vmatprep.subr.mxu0 0.0
    %131 = vmatpush1.msra.mxu0 0.0
    %132 = vmatprep.subr.mxu0 0.0
    %133 = vmatpush1.msra.mxu0 0.0
    %134 = vmatprep.subr.mxu0 0.0
    %135 = vmatpush1.msra.mxu0 0.0
    %136 = vmatprep.subr.mxu0 0.0
    %137 = vmatpush1.msra.mxu0 0.0
    %138 = vmatprep.subr.mxu0 0.0
    %139 = vmatpush1.msra.mxu0 0.0
    %140 = vmatprep.subr.mxu0 0.0
    %141 = vmatpush1.msra.mxu0 0.0
    %142 = vmatprep.subr.mxu0 0.0
    %143 = vmatpush1.msra.mxu0 0.0
    %144 = vmatprep.subr.mxu0 0.0
    %145 = vmatpush1.msra.mxu0 0.0
    %146 = vmatprep.mubr.f32.mxu0 0.0
    %147 = vmatmul.mubr.f32.gmra.mrb[0].mxu0 %v67
    %v148 = vpop.f32.mrb[0].mxu0
    %v149 = vadd.f32 %v48, %v148
    %v150 = vpop.f32.mrb[0].mxu0
    %v151 = vadd.f32 %v52, %v150
    %152 = vdwg.mxu0
    %153 = vmatprep.subr.mxu0 %v80
    %154 = vmatpush1.msra.mxu0 %v77
    %155 = vmatprep.subr.mxu0 0.0
    %156 = vmatpush1.msra.mxu0 0.0
    %157 = vmatprep.subr.mxu0 0.0
    %158 = vmatpush1.msra.mxu0 0.0
    %159 = vmatprep.subr.mxu0 0.0
    %160 = vmatpush1.msra.mxu0 0.0
    %161 = vmatprep.subr.mxu0 0.0
    %162 = vmatpush1.msra.mxu0 0.0
    %163 = vmatprep.subr.mxu0 0.0
    %164 = vmatpush1.msra.mxu0 0.0
    %165 = vmatprep.subr.mxu0 0.0
    %166 = vmatpush1.msra.mxu0 0.0
    %167 = vmatprep.subr.mxu0 0.0
    %168 = vmatpush1.msra.mxu0 0.0
    %169 = vmatprep.subr.mxu0 0.0
    %170 = vmatpush1.msra.mxu0 0.0
    %171 = vmatprep.subr.mxu0 0.0
    %172 = vmatpush1.msra.mxu0 0.0
    %173 = vmatprep.subr.mxu0 0.0
    %174 = vmatpush1.msra.mxu0 0.0
    %175 = vmatprep.subr.mxu0 0.0
    %176 = vmatpush1.msra.mxu0 0.0
    %177 = vmatprep.subr.mxu0 0.0
    %178 = vmatpush1.msra.mxu0 0.0
    %179 = vmatprep.subr.mxu0 0.0
    %180 = vmatpush1.msra.mxu0 0.0
    %181 = vmatprep.subr.mxu0 0.0
    %182 = vmatpush1.msra.mxu0 0.0
    %183 = vmatprep.subr.mxu0 0.0
    %184 = vmatpush1.msra.mxu0 0.0
    %185 = vmatprep.subr.mxu0 0.0
    %186 = vmatpush1.msra.mxu0 0.0
    %187 = vmatprep.subr.mxu0 0.0
    %188 = vmatpush1.msra.mxu0 0.0
    %189 = vmatprep.subr.mxu0 0.0
    %190 = vmatpush1.msra.mxu0 0.0
    %191 = vmatprep.subr.mxu0 0.0
    %192 = vmatpush1.msra.mxu0 0.0
    %193 = vmatprep.subr.mxu0 0.0
    %194 = vmatpush1.msra.mxu0 0.0
    %195 = vmatprep.subr.mxu0 0.0
    %196 = vmatpush1.msra.mxu0 0.0
    %197 = vmatprep.subr.mxu0 0.0
    %198 = vmatpush1.msra.mxu0 0.0
    %199 = vmatprep.subr.mxu0 0.0
    %200 = vmatpush1.msra.mxu0 0.0
    %201 = vmatprep.subr.mxu0 0.0
    %202 = vmatpush1.msra.mxu0 0.0
    %203 = vmatprep.subr.mxu0 0.0
    %204 = vmatpush1.msra.mxu0 0.0
    %205 = vmatprep.subr.mxu0 0.0
    %206 = vmatpush1.msra.mxu0 0.0
    %207 = vmatprep.subr.mxu0 0.0
    %208 = vmatpush1.msra.mxu0 0.0
    %209 = vmatprep.subr.mxu0 0.0
    %210 = vmatpush1.msra.mxu0 0.0
    %211 = vmatprep.subr.mxu0 0.0
    %212 = vmatpush1.msra.mxu0 0.0
    %213 = vmatprep.subr.mxu0 0.0
    %214 = vmatpush1.msra.mxu0 0.0
    %215 = vmatprep.subr.mxu0 0.0
    %216 = vmatpush1.msra.mxu0 0.0
    %217 = vmatprep.mubr.f32.mxu0 0.0
    %218 = vmatmul.mubr.f32.gmra.mrb[0].mxu0 %v67
    %v219 = vpop.f32.mrb[0].mxu0
    %v220 = vadd.f32 %v56, %v219
    %v221 = vpop.f32.mrb[0].mxu0
    %v222 = vadd.f32 %v60, %v221
    %223 = vdwg.mxu0
    %v224 = vld [vmem:[#allocation2] sm:$0xff]
    %v225 = vld [vmem:[#allocation2 + $0x8] sm:$0xff]
    %v226 = vld [vmem:[#allocation2 + $0x10] sm:$0xff]
    %v227 = vld [vmem:[#allocation2 + $0x18] sm:$0xff]
    %v228 = vld [vmem:[#allocation2 + $0x20] sm:$0xff]
    %v229 = vld [vmem:[#allocation2 + $0x28] sm:$0xff]
    %v230 = vld [vmem:[#allocation2 + $0x30] sm:$0xff]
    %v231 = vld [vmem:[#allocation2 + $0x38] sm:$0xff]
    %v232 = vld [vmem:[#allocation2 + $0x40] sm:$0xff]
    %v233 = vld [vmem:[#allocation2 + $0x48] sm:$0xff]
    %v234 = vld [vmem:[#allocation2 + $0x50] sm:$0xff]
    %v235 = vld [vmem:[#allocation2 + $0x58] sm:$0xff]
    %v236 = vld [vmem:[#allocation2 + $0x60] sm:$0xff]
    %v237 = vld [vmem:[#allocation2 + $0x68] sm:$0xff]
    %v238 = vld [vmem:[#allocation2 + $0x70] sm:$0xff]
    %v239 = vld [vmem:[#allocation2 + $0x78] sm:$0xff]
    %v240 = vld [vmem:[#allocation2 + $0x80] sm:$0xff]
    %v241 = vld [vmem:[#allocation2 + $0x88] sm:$0xff]
    %v242 = vld [vmem:[#allocation2 + $0x90] sm:$0xff]
    %v243 = vld [vmem:[#allocation2 + $0x98] sm:$0xff]
    %v244 = vld [vmem:[#allocation2 + $0xa0] sm:$0xff]
    %v245 = vld [vmem:[#allocation2 + $0xa8] sm:$0xff]
    %v246 = vld [vmem:[#allocation2 + $0xb0] sm:$0xff]
    %v247 = vld [vmem:[#allocation2 + $0xb8] sm:$0xff]
    %v248 = vld [vmem:[#allocation2 + $0xc0] sm:$0xff]
    %v249 = vld [vmem:[#allocation2 + $0xc8] sm:$0xff]
    %v250 = vld [vmem:[#allocation2 + $0xd0] sm:$0xff]
    %v251 = vld [vmem:[#allocation2 + $0xd8] sm:$0xff]
    %v252 = vld [vmem:[#allocation2 + $0xe0] sm:$0xff]
    %v253 = vld [vmem:[#allocation2 + $0xe8] sm:$0xff]
    %v254 = vld [vmem:[#allocation2 + $0xf0] sm:$0xff]
    %v255 = vld [vmem:[#allocation2 + $0xf8] sm:$0xff]
    %v288 = vunpack.c.l.b16 %v224
    %v289 = vunpack.c.h.b16 %v224
    %v290 = vunpack.c.l.b16 %v225
    %v291 = vunpack.c.h.b16 %v225
    %v292 = vunpack.c.l.b16 %v226
    %v293 = vunpack.c.h.b16 %v226
    %v294 = vunpack.c.l.b16 %v227
    %v295 = vunpack.c.h.b16 %v227
    %v296 = vunpack.c.l.b16 %v228
    %v297 = vunpack.c.h.b16 %v228
    %v298 = vunpack.c.l.b16 %v229
    %v299 = vunpack.c.h.b16 %v229
    %v300 = vunpack.c.l.b16 %v230
    %v301 = vunpack.c.h.b16 %v230
    %v302 = vunpack.c.l.b16 %v231
    %v303 = vunpack.c.h.b16 %v231
    %v304 = vunpack.c.l.b16 %v232
    %v305 = vunpack.c.h.b16 %v232
    %v306 = vunpack.c.l.b16 %v233
    %v307 = vunpack.c.h.b16 %v233
    %v308 = vunpack.c.l.b16 %v234
    %v309 = vunpack.c.h.b16 %v234
    %v310 = vunpack.c.l.b16 %v235
    %v311 = vunpack.c.h.b16 %v235
    %v312 = vunpack.c.l.b16 %v236
    %v313 = vunpack.c.h.b16 %v236
    %v314 = vunpack.c.l.b16 %v237
    %v315 = vunpack.c.h.b16 %v237
    %v316 = vunpack.c.l.b16 %v238
    %v317 = vunpack.c.h.b16 %v238
    %v318 = vunpack.c.l.b16 %v239
    %v319 = vunpack.c.h.b16 %v239
    %v320 = vunpack.c.l.b16 %v240
    %v321 = vunpack.c.h.b16 %v240
    %v322 = vunpack.c.l.b16 %v241
    %v323 = vunpack.c.h.b16 %v241
    %v324 = vunpack.c.l.b16 %v242
    %v325 = vunpack.c.h.b16 %v242
    %v326 = vunpack.c.l.b16 %v243
    %v327 = vunpack.c.h.b16 %v243
    %v328 = vunpack.c.l.b16 %v244
    %v329 = vunpack.c.h.b16 %v244
    %v330 = vunpack.c.l.b16 %v245
    %v331 = vunpack.c.h.b16 %v245
    %v332 = vunpack.c.l.b16 %v246
    %v333 = vunpack.c.h.b16 %v246
    %v334 = vunpack.c.l.b16 %v247
    %v335 = vunpack.c.h.b16 %v247
    %v336 = vunpack.c.l.b16 %v248
    %v337 = vunpack.c.h.b16 %v248
    %v338 = vunpack.c.l.b16 %v249
    %v339 = vunpack.c.h.b16 %v249
    %v340 = vunpack.c.l.b16 %v250
    %v341 = vunpack.c.h.b16 %v250
    %v342 = vunpack.c.l.b16 %v251
    %v343 = vunpack.c.h.b16 %v251
    %v344 = vunpack.c.l.b16 %v252
    %v345 = vunpack.c.h.b16 %v252
    %v346 = vunpack.c.l.b16 %v253
    %v347 = vunpack.c.h.b16 %v253
    %v348 = vunpack.c.l.b16 %v254
    %v349 = vunpack.c.h.b16 %v254
    %v350 = vunpack.c.l.b16 %v255
    %v351 = vunpack.c.h.b16 %v255
    %v352 = vpack.c.b16 %v292, %v288
    %v353 = vpack.c.b16 %v293, %v289
    %v354 = vpack.c.b16 %v294, %v290
    %v355 = vpack.c.b16 %v295, %v291
    %v356 = vpack.c.b16 %v300, %v296
    %v357 = vpack.c.b16 %v301, %v297
    %v358 = vpack.c.b16 %v302, %v298
    %v359 = vpack.c.b16 %v303, %v299
    %v360 = vpack.c.b16 %v308, %v304
    %v361 = vpack.c.b16 %v309, %v305
    %v362 = vpack.c.b16 %v310, %v306
    %v363 = vpack.c.b16 %v311, %v307
    %v364 = vpack.c.b16 %v316, %v312
    %v365 = vpack.c.b16 %v317, %v313
    %v366 = vpack.c.b16 %v318, %v314
    %v367 = vpack.c.b16 %v319, %v315
    %v368 = vpack.c.b16 %v324, %v320
    %v369 = vpack.c.b16 %v325, %v321
    %v370 = vpack.c.b16 %v326, %v322
    %v371 = vpack.c.b16 %v327, %v323
    %v372 = vpack.c.b16 %v332, %v328
    %v373 = vpack.c.b16 %v333, %v329
    %v374 = vpack.c.b16 %v334, %v330
    %v375 = vpack.c.b16 %v335, %v331
    %v376 = vpack.c.b16 %v340, %v336
    %v377 = vpack.c.b16 %v341, %v337
    %v378 = vpack.c.b16 %v342, %v338
    %v379 = vpack.c.b16 %v343, %v339
    %v380 = vpack.c.b16 %v348, %v344
    %v381 = vpack.c.b16 %v349, %v345
    %v382 = vpack.c.b16 %v350, %v346
    %v383 = vpack.c.b16 %v351, %v347
    %416 = vmatprep.subr.bf16.mxu0 %v353
    %417 = vmatpush1.bf16.msra.mxu0 %v352
    %418 = vmatprep.subr.bf16.mxu0 %v357
    %419 = vmatpush1.bf16.msra.mxu0 %v356
    %420 = vmatprep.subr.bf16.mxu0 %v361
    %421 = vmatpush1.bf16.msra.mxu0 %v360
    %422 = vmatprep.subr.bf16.mxu0 %v365
    %423 = vmatpush1.bf16.msra.mxu0 %v364
    %424 = vmatprep.subr.bf16.mxu0 %v369
    %425 = vmatpush1.bf16.msra.mxu0 %v368
    %426 = vmatprep.subr.bf16.mxu0 %v373
    %427 = vmatpush1.bf16.msra.mxu0 %v372
    %428 = vmatprep.subr.bf16.mxu0 %v377
    %429 = vmatpush1.bf16.msra.mxu0 %v376
    %430 = vmatprep.subr.bf16.mxu0 %v381
    %431 = vmatpush1.bf16.msra.mxu0 %v380
    %432 = vmatprep.subr.bf16.mxu0 0
    %433 = vmatpush1.bf16.msra.mxu0 0
    %434 = vmatprep.subr.bf16.mxu0 0
    %435 = vmatpush1.bf16.msra.mxu0 0
    %436 = vmatprep.subr.bf16.mxu0 0
    %437 = vmatpush1.bf16.msra.mxu0 0
    %438 = vmatprep.subr.bf16.mxu0 0
    %439 = vmatpush1.bf16.msra.mxu0 0
    %440 = vmatprep.subr.bf16.mxu0 0
    %441 = vmatpush1.bf16.msra.mxu0 0
    %442 = vmatprep.subr.bf16.mxu0 0
    %443 = vmatpush1.bf16.msra.mxu0 0
    %444 = vmatprep.subr.bf16.mxu0 0
    %445 = vmatpush1.bf16.msra.mxu0 0
    %446 = vmatprep.subr.bf16.mxu0 0
    %447 = vmatpush1.bf16.msra.mxu0 0
    %448 = vmatprep.mubr.bf16.mxu0 0
    %449 = vmatmul.mubr.bf16.gmra.mrb[0].mxu0 0
    %v450 = vpop.f32.mrb[0].mxu0
    %v451 = vadd.f32 0.0, %v450
    %v452 = vpop.f32.mrb[0].mxu0
    %v453 = vadd.f32 0.0, %v452
    %v454 = vpop.f32.mrb[0].mxu0
    %v455 = vpop.f32.mrb[0].mxu0
    %456 = vdwg.mxu0
    %457 = vmatprep.subr.bf16.mxu0 %v355
    %458 = vmatpush1.bf16.msra.mxu0 %v354
    %459 = vmatprep.subr.bf16.mxu0 %v359
    %460 = vmatpush1.bf16.msra.mxu0 %v358
    %461 = vmatprep.subr.bf16.mxu0 %v363
    %462 = vmatpush1.bf16.msra.mxu0 %v362
    %463 = vmatprep.subr.bf16.mxu0 %v367
    %464 = vmatpush1.bf16.msra.mxu0 %v366
    %465 = vmatprep.subr.bf16.mxu0 %v371
    %466 = vmatpush1.bf16.msra.mxu0 %v370
    %467 = vmatprep.subr.bf16.mxu0 %v375
    %468 = vmatpush1.bf16.msra.mxu0 %v374
    %469 = vmatprep.subr.bf16.mxu0 %v379
    %470 = vmatpush1.bf16.msra.mxu0 %v378
    %471 = vmatprep.subr.bf16.mxu0 %v383
    %472 = vmatpush1.bf16.msra.mxu0 %v382
    %473 = vmatprep.subr.bf16.mxu0 0
    %474 = vmatpush1.bf16.msra.mxu0 0
    %475 = vmatprep.subr.bf16.mxu0 0
    %476 = vmatpush1.bf16.msra.mxu0 0
    %477 = vmatprep.subr.bf16.mxu0 0
    %478 = vmatpush1.bf16.msra.mxu0 0
    %479 = vmatprep.subr.bf16.mxu0 0
    %480 = vmatpush1.bf16.msra.mxu0 0
    %481 = vmatprep.subr.bf16.mxu0 0
    %482 = vmatpush1.bf16.msra.mxu0 0
    %483 = vmatprep.subr.bf16.mxu0 0
    %484 = vmatpush1.bf16.msra.mxu0 0
    %485 = vmatprep.subr.bf16.mxu0 0
    %486 = vmatpush1.bf16.msra.mxu0 0
    %487 = vmatprep.subr.bf16.mxu0 0
    %488 = vmatpush1.bf16.msra.mxu0 0
    %489 = vmatprep.mubr.bf16.mxu0 0
    %490 = vmatmul.mubr.bf16.gmra.mrb[0].mxu0 0
    %v491 = vpop.f32.mrb[0].mxu0
    %v492 = vadd.f32 0.0, %v491
    %v493 = vpop.f32.mrb[0].mxu0
    %v494 = vadd.f32 0.0, %v493
    %v495 = vpop.f32.mrb[0].mxu0
    %v496 = vpop.f32.mrb[0].mxu0
    %497 = vdwg.mxu0
    %v498 = vadd.f32 %v149, %v451
    %v499 = vadd.f32 %v151, %v453
    %v500 = vadd.f32 %v220, %v492
    %v501 = vadd.f32 %v222, %v494
    %v502 = vxor.u32 %v498, 2147483648
    %v503 = vmul.f32 %v502, 1.442695
    %v504 = vpow.pop %v503
    %v505 = vadd.f32 %v504, 1.0
    %v506 = vrcp.pop %v505
    %v507 = vmul.f32 1.0, %v506
    %v508 = vxor.u32 %v499, 2147483648
    %v509 = vmul.f32 %v508, 1.442695
    %v510 = vpow.pop %v509
    %v511 = vadd.f32 %v510, 1.0
    %v512 = vrcp.pop %v511
    %v513 = vmul.f32 1.0, %v512
    %v514 = vtanh.pop %v500
    %v515 = vxor.u32 %v501, 2147483648
    %v516 = vmul.f32 %v515, 1.442695
    %v517 = vpow.pop %v516
    %v518 = vadd.f32 %v517, 1.0
    %v519 = vrcp.pop %v518
    %v520 = vmul.f32 1.0, %v519
    %v521 = vmul.f32 %v513, 0.0
    %v522 = vmul.f32 %v507, %v514
    %v523 = vadd.f32 %v521, %v522
    %v524 = vtanh.pop %v523
    %v525 = vmul.f32 %v520, %v524
    %v526 = vpack.c.bf16 %v525, %v525
    %527 = vmatprep.subr.bf16.mxu0 %v353
    %528 = vmatpush1.bf16.msra.mxu0 %v352
    %529 = vmatprep.subr.bf16.mxu0 %v357
    %530 = vmatpush1.bf16.msra.mxu0 %v356
    %531 = vmatprep.subr.bf16.mxu0 %v361
    %532 = vmatpush1.bf16.msra.mxu0 %v360
    %533 = vmatprep.subr.bf16.mxu0 %v365
    %534 = vmatpush1.bf16.msra.mxu0 %v364
    %535 = vmatprep.subr.bf16.mxu0 %v369
    %536 = vmatpush1.bf16.msra.mxu0 %v368
    %537 = vmatprep.subr.bf16.mxu0 %v373
    %538 = vmatpush1.bf16.msra.mxu0 %v372
    %539 = vmatprep.subr.bf16.mxu0 %v377
    %540 = vmatpush1.bf16.msra.mxu0 %v376
    %541 = vmatprep.subr.bf16.mxu0 %v381
    %542 = vmatpush1.bf16.msra.mxu0 %v380
    %543 = vmatprep.subr.bf16.mxu0 0
    %544 = vmatpush1.bf16.msra.mxu0 0
    %545 = vmatprep.subr.bf16.mxu0 0
    %546 = vmatpush1.bf16.msra.mxu0 0
    %547 = vmatprep.subr.bf16.mxu0 0
    %548 = vmatpush1.bf16.msra.mxu0 0
    %549 = vmatprep.subr.bf16.mxu0 0
    %550 = vmatpush1.bf16.msra.mxu0 0
    %551 = vmatprep.subr.bf16.mxu0 0
    %552 = vmatpush1.bf16.msra.mxu0 0
    %553 = vmatprep.subr.bf16.mxu0 0
    %554 = vmatpush1.bf16.msra.mxu0 0
    %555 = vmatprep.subr.bf16.mxu0 0
    %556 = vmatpush1.bf16.msra.mxu0 0
    %557 = vmatprep.subr.bf16.mxu0 0
    %558 = vmatpush1.bf16.msra.mxu0 0
    %559 = vmatprep.mubr.bf16.mxu0 0
    %560 = vmatmul.mubr.bf16.gmra.mrb[0].mxu0 %v526
    %v561 = vpop.f32.mrb[0].mxu0
    %v562 = vadd.f32 0.0, %v561
    %v563 = vpop.f32.mrb[0].mxu0
    %v564 = vadd.f32 0.0, %v563
    %v565 = vpop.f32.mrb[0].mxu0
    %v566 = vpop.f32.mrb[0].mxu0
    %567 = vdwg.mxu0
    %568 = vmatprep.subr.bf16.mxu0 %v355
    %569 = vmatpush1.bf16.msra.mxu0 %v354
    %570 = vmatprep.subr.bf16.mxu0 %v359
    %571 = vmatpush1.bf16.msra.mxu0 %v358
    %572 = vmatprep.subr.bf16.mxu0 %v363
    %573 = vmatpush1.bf16.msra.mxu0 %v362
    %574 = vmatprep.subr.bf16.mxu0 %v367
    %575 = vmatpush1.bf16.msra.mxu0 %v366
    %576 = vmatprep.subr.bf16.mxu0 %v371
    %577 = vmatpush1.bf16.msra.mxu0 %v370
    %578 = vmatprep.subr.bf16.mxu0 %v375
    %579 = vmatpush1.bf16.msra.mxu0 %v374
    %580 = vmatprep.subr.bf16.mxu0 %v379
    %581 = vmatpush1.bf16.msra.mxu0 %v378
    %582 = vmatprep.subr.bf16.mxu0 %v383
    %583 = vmatpush1.bf16.msra.mxu0 %v382
    %584 = vmatprep.subr.bf16.mxu0 0
    %585 = vmatpush1.bf16.msra.mxu0 0
    %586 = vmatprep.subr.bf16.mxu0 0
    %587 = vmatpush1.bf16.msra.mxu0 0
    %588 = vmatprep.subr.bf16.mxu0 0
    %589 = vmatpush1.bf16.msra.mxu0 0
    %590 = vmatprep.subr.bf16.mxu0 0
    %591 = vmatpush1.bf16.msra.mxu0 0
    %592 = vmatprep.subr.bf16.mxu0 0
    %593 = vmatpush1.bf16.msra.mxu0 0
    %594 = vmatprep.subr.bf16.mxu0 0
    %595 = vmatpush1.bf16.msra.mxu0 0
    %596 = vmatprep.subr.bf16.mxu0 0
    %597 = vmatpush1.bf16.msra.mxu0 0
    %598 = vmatprep.subr.bf16.mxu0 0
    %599 = vmatpush1.bf16.msra.mxu0 0
    %600 = vmatprep.mubr.bf16.mxu0 0
    %601 = vmatmul.mubr.bf16.gmra.mrb[0].mxu0 %v526
    %v602 = vpop.f32.mrb[0].mxu0
    %v603 = vadd.f32 0.0, %v602
    %v604 = vpop.f32.mrb[0].mxu0
    %v605 = vadd.f32 0.0, %v604
    %v606 = vpop.f32.mrb[0].mxu0
    %v607 = vpop.f32.mrb[0].mxu0
    %608 = vdwg.mxu0
    %v613 = vrot.slane %v562, 7
    %v614 = vrot.slane %v564, 7
    %v615 = vrot.slane %v603, 7
    %v616 = vrot.slane %v605, 7
    %v621 = vadd.f32 %v149, %v613
    %v622 = vadd.f32 %v151, %v614
    %v623 = vadd.f32 %v220, %v615
    %v624 = vadd.f32 %v222, %v616
    %v625 = vxor.u32 %v621, 2147483648
    %v626 = vmul.f32 %v625, 1.442695
    %v627 = vpow.pop %v626
    %v628 = vadd.f32 %v627, 1.0
    %v629 = vrcp.pop %v628
    %v630 = vmul.f32 1.0, %v629
    %v631 = vxor.u32 %v622, 2147483648
    %v632 = vmul.f32 %v631, 1.442695
    %v633 = vpow.pop %v632
    %v634 = vadd.f32 %v633, 1.0
    %v635 = vrcp.pop %v634
    %v636 = vmul.f32 1.0, %v635
    %v637 = vtanh.pop %v623
    %v638 = vxor.u32 %v624, 2147483648
    %v639 = vmul.f32 %v638, 1.442695
    %v640 = vpow.pop %v639
    %v641 = vadd.f32 %v640, 1.0
    %v642 = vrcp.pop %v641
    %v643 = vmul.f32 1.0, %v642
    %v645 = vrot.slane %v523, 7
    %v647 = vmul.f32 %v636, %v645
    %v648 = vmul.f32 %v630, %v637
    %v649 = vadd.f32 %v647, %v648
    %v650 = vtanh.pop %v649
    %v651 = vmul.f32 %v643, %v650
    %v652 = vpack.c.bf16 %v651, %v651
    %v654 = vshrl.u32 %v652, 16
    %657 = vmatprep.subr.bf16.mxu0 %v353
    %658 = vmatpush1.bf16.msra.mxu0 %v352
    %659 = vmatprep.subr.bf16.mxu0 %v357
    %660 = vmatpush1.bf16.msra.mxu0 %v356
    %661 = vmatprep.subr.bf16.mxu0 %v361
    %662 = vmatpush1.bf16.msra.mxu0 %v360
    %663 = vmatprep.subr.bf16.mxu0 %v365
    %664 = vmatpush1.bf16.msra.mxu0 %v364
    %665 = vmatprep.subr.bf16.mxu0 %v369
    %666 = vmatpush1.bf16.msra.mxu0 %v368
    %667 = vmatprep.subr.bf16.mxu0 %v373
    %668 = vmatpush1.bf16.msra.mxu0 %v372
    %669 = vmatprep.subr.bf16.mxu0 %v377
    %670 = vmatpush1.bf16.msra.mxu0 %v376
    %671 = vmatprep.subr.bf16.mxu0 %v381
    %672 = vmatpush1.bf16.msra.mxu0 %v380
    %673 = vmatprep.subr.bf16.mxu0 0
    %674 = vmatpush1.bf16.msra.mxu0 0
    %675 = vmatprep.subr.bf16.mxu0 0
    %676 = vmatpush1.bf16.msra.mxu0 0
    %677 = vmatprep.subr.bf16.mxu0 0
    %678 = vmatpush1.bf16.msra.mxu0 0
    %679 = vmatprep.subr.bf16.mxu0 0
    %680 = vmatpush1.bf16.msra.mxu0 0
    %681 = vmatprep.subr.bf16.mxu0 0
    %682 = vmatpush1.bf16.msra.mxu0 0
    %683 = vmatprep.subr.bf16.mxu0 0
    %684 = vmatpush1.bf16.msra.mxu0 0
    %685 = vmatprep.subr.bf16.mxu0 0
    %686 = vmatpush1.bf16.msra.mxu0 0
    %687 = vmatprep.subr.bf16.mxu0 0
    %688 = vmatpush1.bf16.msra.mxu0 0
    %689 = vmatprep.mubr.bf16.mxu0 0
    %690 = vmatmul.mubr.bf16.gmra.mrb[0].mxu0 %v654
    %v691 = vpop.f32.mrb[0].mxu0
    %v692 = vadd.f32 0.0, %v691
    %v693 = vpop.f32.mrb[0].mxu0
    %v694 = vadd.f32 0.0, %v693
    %v695 = vpop.f32.mrb[0].mxu0
    %v696 = vpop.f32.mrb[0].mxu0
    %697 = vdwg.mxu0
    %698 = vmatprep.subr.bf16.mxu0 %v355
    %699 = vmatpush1.bf16.msra.mxu0 %v354
    %700 = vmatprep.subr.bf16.mxu0 %v359
    %701 = vmatpush1.bf16.msra.mxu0 %v358
    %702 = vmatprep.subr.bf16.mxu0 %v363
    %703 = vmatpush1.bf16.msra.mxu0 %v362
    %704 = vmatprep.subr.bf16.mxu0 %v367
    %705 = vmatpush1.bf16.msra.mxu0 %v366
    %706 = vmatprep.subr.bf16.mxu0 %v371
    %707 = vmatpush1.bf16.msra.mxu0 %v370
    %708 = vmatprep.subr.bf16.mxu0 %v375
    %709 = vmatpush1.bf16.msra.mxu0 %v374
    %710 = vmatprep.subr.bf16.mxu0 %v379
    %711 = vmatpush1.bf16.msra.mxu0 %v378
    %712 = vmatprep.subr.bf16.mxu0 %v383
    %713 = vmatpush1.bf16.msra.mxu0 %v382
    %714 = vmatprep.subr.bf16.mxu0 0
    %715 = vmatpush1.bf16.msra.mxu0 0
    %716 = vmatprep.subr.bf16.mxu0 0
    %717 = vmatpush1.bf16.msra.mxu0 0
    %718 = vmatprep.subr.bf16.mxu0 0
    %719 = vmatpush1.bf16.msra.mxu0 0
    %720 = vmatprep.subr.bf16.mxu0 0
    %721 = vmatpush1.bf16.msra.mxu0 0
    %722 = vmatprep.subr.bf16.mxu0 0
    %723 = vmatpush1.bf16.msra.mxu0 0
    %724 = vmatprep.subr.bf16.mxu0 0
    %725 = vmatpush1.bf16.msra.mxu0 0
    %726 = vmatprep.subr.bf16.mxu0 0
    %727 = vmatpush1.bf16.msra.mxu0 0
    %728 = vmatprep.subr.bf16.mxu0 0
    %729 = vmatpush1.bf16.msra.mxu0 0
    %730 = vmatprep.mubr.bf16.mxu0 0
    %731 = vmatmul.mubr.bf16.gmra.mrb[0].mxu0 %v654
    %v732 = vpop.f32.mrb[0].mxu0
    %v733 = vadd.f32 0.0, %v732
    %v734 = vpop.f32.mrb[0].mxu0
    %v735 = vadd.f32 0.0, %v734
    %v736 = vpop.f32.mrb[0].mxu0
    %v737 = vpop.f32.mrb[0].mxu0
    %738 = vdwg.mxu0
    %v743 = vrot.slane %v692, 6
    %v744 = vrot.slane %v694, 6
    %v745 = vrot.slane %v733, 6
    %v746 = vrot.slane %v735, 6
    %v751 = vadd.f32 %v149, %v743
    %v752 = vadd.f32 %v151, %v744
    %v753 = vadd.f32 %v220, %v745
    %v754 = vadd.f32 %v222, %v746
    %v755 = vxor.u32 %v751, 2147483648
    %v756 = vmul.f32 %v755, 1.442695
    %v757 = vpow.pop %v756
    %v758 = vadd.f32 %v757, 1.0
    %v759 = vrcp.pop %v758
    %v760 = vmul.f32 1.0, %v759
    %v761 = vxor.u32 %v752, 2147483648
    %v762 = vmul.f32 %v761, 1.442695
    %v763 = vpow.pop %v762
    %v764 = vadd.f32 %v763, 1.0
    %v765 = vrcp.pop %v764
    %v766 = vmul.f32 1.0, %v765
    %v767 = vtanh.pop %v753
    %v768 = vxor.u32 %v754, 2147483648
    %v769 = vmul.f32 %v768, 1.442695
    %v770 = vpow.pop %v769
    %v771 = vadd.f32 %v770, 1.0
    %v772 = vrcp.pop %v771
    %v773 = vmul.f32 1.0, %v772
    %v775 = vrot.slane %v649, 7
    %v777 = vmul.f32 %v766, %v775
    %v778 = vmul.f32 %v760, %v767
    %v779 = vadd.f32 %v777, %v778
    %v780 = vtanh.pop %v779
    %v781 = vmul.f32 %v773, %v780
    %v782 = vpack.c.bf16 %v781, %v781
    %v784 = vrot.slane %v782, 1
    %786 = vmatprep.subr.bf16.mxu0 %v353
    %787 = vmatpush1.bf16.msra.mxu0 %v352
    %788 = vmatprep.subr.bf16.mxu0 %v357
    %789 = vmatpush1.bf16.msra.mxu0 %v356
    %790 = vmatprep.subr.bf16.mxu0 %v361
    %791 = vmatpush1.bf16.msra.mxu0 %v360
    %792 = vmatprep.subr.bf16.mxu0 %v365
    %793 = vmatpush1.bf16.msra.mxu0 %v364
    %794 = vmatprep.subr.bf16.mxu0 %v369
    %795 = vmatpush1.bf16.msra.mxu0 %v368
    %796 = vmatprep.subr.bf16.mxu0 %v373
    %797 = vmatpush1.bf16.msra.mxu0 %v372
    %798 = vmatprep.subr.bf16.mxu0 %v377
    %799 = vmatpush1.bf16.msra.mxu0 %v376
    %800 = vmatprep.subr.bf16.mxu0 %v381
    %801 = vmatpush1.bf16.msra.mxu0 %v380
    %802 = vmatprep.subr.bf16.mxu0 0
    %803 = vmatpush1.bf16.msra.mxu0 0
    %804 = vmatprep.subr.bf16.mxu0 0
    %805 = vmatpush1.bf16.msra.mxu0 0
    %806 = vmatprep.subr.bf16.mxu0 0
    %807 = vmatpush1.bf16.msra.mxu0 0
    %808 = vmatprep.subr.bf16.mxu0 0
    %809 = vmatpush1.bf16.msra.mxu0 0
    %810 = vmatprep.subr.bf16.mxu0 0
    %811 = vmatpush1.bf16.msra.mxu0 0
    %812 = vmatprep.subr.bf16.mxu0 0
    %813 = vmatpush1.bf16.msra.mxu0 0
    %814 = vmatprep.subr.bf16.mxu0 0
    %815 = vmatpush1.bf16.msra.mxu0 0
    %816 = vmatprep.subr.bf16.mxu0 0
    %817 = vmatpush1.bf16.msra.mxu0 0
    %818 = vmatprep.mubr.bf16.mxu0 0
    %819 = vmatmul.mubr.bf16.gmra.mrb[0].mxu0 %v784
    %v820 = vpop.f32.mrb[0].mxu0
    %v821 = vadd.f32 0.0, %v820
    %v822 = vpop.f32.mrb[0].mxu0
    %v823 = vadd.f32 0.0, %v822
    %v824 = vpop.f32.mrb[0].mxu0
    %v825 = vpop.f32.mrb[0].mxu0
    %826 = vdwg.mxu0
    %827 = vmatprep.subr.bf16.mxu0 %v355
    %828 = vmatpush1.bf16.msra.mxu0 %v354
    %829 = vmatprep.subr.bf16.mxu0 %v359
    %830 = vmatpush1.bf16.msra.mxu0 %v358
    %831 = vmatprep.subr.bf16.mxu0 %v363
    %832 = vmatpush1.bf16.msra.mxu0 %v362
    %833 = vmatprep.subr.bf16.mxu0 %v367
    %834 = vmatpush1.bf16.msra.mxu0 %v366
    %835 = vmatprep.subr.bf16.mxu0 %v371
    %836 = vmatpush1.bf16.msra.mxu0 %v370
    %837 = vmatprep.subr.bf16.mxu0 %v375
    %838 = vmatpush1.bf16.msra.mxu0 %v374
    %839 = vmatprep.subr.bf16.mxu0 %v379
    %840 = vmatpush1.bf16.msra.mxu0 %v378
    %841 = vmatprep.subr.bf16.mxu0 %v383
    %842 = vmatpush1.bf16.msra.mxu0 %v382
    %843 = vmatprep.subr.bf16.mxu0 0
    %844 = vmatpush1.bf16.msra.mxu0 0
    %845 = vmatprep.subr.bf16.mxu0 0
    %846 = vmatpush1.bf16.msra.mxu0 0
    %847 = vmatprep.subr.bf16.mxu0 0
    %848 = vmatpush1.bf16.msra.mxu0 0
    %849 = vmatprep.subr.bf16.mxu0 0
    %850 = vmatpush1.bf16.msra.mxu0 0
    %851 = vmatprep.subr.bf16.mxu0 0
    %852 = vmatpush1.bf16.msra.mxu0 0
    %853 = vmatprep.subr.bf16.mxu0 0
    %854 = vmatpush1.bf16.msra.mxu0 0
    %855 = vmatprep.subr.bf16.mxu0 0
    %856 = vmatpush1.bf16.msra.mxu0 0
    %857 = vmatprep.subr.bf16.mxu0 0
    %858 = vmatpush1.bf16.msra.mxu0 0
    %859 = vmatprep.mubr.bf16.mxu0 0
    %860 = vmatmul.mubr.bf16.gmra.mrb[0].mxu0 %v784
    %v861 = vpop.f32.mrb[0].mxu0
    %v862 = vadd.f32 0.0, %v861
    %v863 = vpop.f32.mrb[0].mxu0
    %v864 = vadd.f32 0.0, %v863
    %v865 = vpop.f32.mrb[0].mxu0
    %v866 = vpop.f32.mrb[0].mxu0
    %867 = vdwg.mxu0
    %v872 = vrot.slane %v821, 5
    %v873 = vrot.slane %v823, 5
    %v874 = vrot.slane %v862, 5
    %v875 = vrot.slane %v864, 5
    %v880 = vadd.f32 %v149, %v872
    %v881 = vadd.f32 %v151, %v873
    %v882 = vadd.f32 %v220, %v874
    %v883 = vadd.f32 %v222, %v875
    %v884 = vxor.u32 %v880, 2147483648
    %v885 = vmul.f32 %v884, 1.442695
    %v886 = vpow.pop %v885
    %v887 = vadd.f32 %v886, 1.0
    %v888 = vrcp.pop %v887
    %v889 = vmul.f32 1.0, %v888
    %v890 = vxor.u32 %v881, 2147483648
    %v891 = vmul.f32 %v890, 1.442695
    %v892 = vpow.pop %v891
    %v893 = vadd.f32 %v892, 1.0
    %v894 = vrcp.pop %v893
    %v895 = vmul.f32 1.0, %v894
    %v896 = vtanh.pop %v882
    %v897 = vxor.u32 %v883, 2147483648
    %v898 = vmul.f32 %v897, 1.442695
    %v899 = vpow.pop %v898
    %v900 = vadd.f32 %v899, 1.0
    %v901 = vrcp.pop %v900
    %v902 = vmul.f32 1.0, %v901
    %v904 = vrot.slane %v779, 7
    %v906 = vmul.f32 %v895, %v904
    %v907 = vmul.f32 %v889, %v896
    %v908 = vadd.f32 %v906, %v907
    %v909 = vtanh.pop %v908
    %v910 = vmul.f32 %v902, %v909
    %v911 = vpack.c.bf16 %v910, %v910
    %v913 = vshrl.u32 %v911, 16
    %v915 = vrot.slane %v913, 1
    %917 = vmatprep.subr.bf16.mxu0 %v353
    %918 = vmatpush1.bf16.msra.mxu0 %v352
    %919 = vmatprep.subr.bf16.mxu0 %v357
    %920 = vmatpush1.bf16.msra.mxu0 %v356
    %921 = vmatprep.subr.bf16.mxu0 %v361
    %922 = vmatpush1.bf16.msra.mxu0 %v360
    %923 = vmatprep.subr.bf16.mxu0 %v365
    %924 = vmatpush1.bf16.msra.mxu0 %v364
    %925 = vmatprep.subr.bf16.mxu0 %v369
    %926 = vmatpush1.bf16.msra.mxu0 %v368
    %927 = vmatprep.subr.bf16.mxu0 %v373
    %928 = vmatpush1.bf16.msra.mxu0 %v372
    %929 = vmatprep.subr.bf16.mxu0 %v377
    %930 = vmatpush1.bf16.msra.mxu0 %v376
    %931 = vmatprep.subr.bf16.mxu0 %v381
    %932 = vmatpush1.bf16.msra.mxu0 %v380
    %933 = vmatprep.subr.bf16.mxu0 0
    %934 = vmatpush1.bf16.msra.mxu0 0
    %935 = vmatprep.subr.bf16.mxu0 0
    %936 = vmatpush1.bf16.msra.mxu0 0
    %937 = vmatprep.subr.bf16.mxu0 0
    %938 = vmatpush1.bf16.msra.mxu0 0
    %939 = vmatprep.subr.bf16.mxu0 0
    %940 = vmatpush1.bf16.msra.mxu0 0
    %941 = vmatprep.subr.bf16.mxu0 0
    %942 = vmatpush1.bf16.msra.mxu0 0
    %943 = vmatprep.subr.bf16.mxu0 0
    %944 = vmatpush1.bf16.msra.mxu0 0
    %945 = vmatprep.subr.bf16.mxu0 0
    %946 = vmatpush1.bf16.msra.mxu0 0
    %947 = vmatprep.subr.bf16.mxu0 0
    %948 = vmatpush1.bf16.msra.mxu0 0
    %949 = vmatprep.mubr.bf16.mxu0 0
    %950 = vmatmul.mubr.bf16.gmra.mrb[0].mxu0 %v915
    %v951 = vpop.f32.mrb[0].mxu0
    %v952 = vadd.f32 0.0, %v951
    %v953 = vpop.f32.mrb[0].mxu0
    %v954 = vadd.f32 0.0, %v953
    %v955 = vpop.f32.mrb[0].mxu0
    %v956 = vpop.f32.mrb[0].mxu0
    %957 = vdwg.mxu0
    %958 = vmatprep.subr.bf16.mxu0 %v355
    %959 = vmatpush1.bf16.msra.mxu0 %v354
    %960 = vmatprep.subr.bf16.mxu0 %v359
    %961 = vmatpush1.bf16.msra.mxu0 %v358
    %962 = vmatprep.subr.bf16.mxu0 %v363
    %963 = vmatpush1.bf16.msra.mxu0 %v362
    %964 = vmatprep.subr.bf16.mxu0 %v367
    %965 = vmatpush1.bf16.msra.mxu0 %v366
    %966 = vmatprep.subr.bf16.mxu0 %v371
    %967 = vmatpush1.bf16.msra.mxu0 %v370
    %968 = vmatprep.subr.bf16.mxu0 %v375
    %969 = vmatpush1.bf16.msra.mxu0 %v374
    %970 = vmatprep.subr.bf16.mxu0 %v379
    %971 = vmatpush1.bf16.msra.mxu0 %v378
    %972 = vmatprep.subr.bf16.mxu0 %v383
    %973 = vmatpush1.bf16.msra.mxu0 %v382
    %974 = vmatprep.subr.bf16.mxu0 0
    %975 = vmatpush1.bf16.msra.mxu0 0
    %976 = vmatprep.subr.bf16.mxu0 0
    %977 = vmatpush1.bf16.msra.mxu0 0
    %978 = vmatprep.subr.bf16.mxu0 0
    %979 = vmatpush1.bf16.msra.mxu0 0
    %980 = vmatprep.subr.bf16.mxu0 0
    %981 = vmatpush1.bf16.msra.mxu0 0
    %982 = vmatprep.subr.bf16.mxu0 0
    %983 = vmatpush1.bf16.msra.mxu0 0
    %984 = vmatprep.subr.bf16.mxu0 0
    %985 = vmatpush1.bf16.msra.mxu0 0
    %986 = vmatprep.subr.bf16.mxu0 0
    %987 = vmatpush1.bf16.msra.mxu0 0
    %988 = vmatprep.subr.bf16.mxu0 0
    %989 = vmatpush1.bf16.msra.mxu0 0
    %990 = vmatprep.mubr.bf16.mxu0 0
    %991 = vmatmul.mubr.bf16.gmra.mrb[0].mxu0 %v915
    %v992 = vpop.f32.mrb[0].mxu0
    %v993 = vadd.f32 0.0, %v992
    %v994 = vpop.f32.mrb[0].mxu0
    %v995 = vadd.f32 0.0, %v994
    %v996 = vpop.f32.mrb[0].mxu0
    %v997 = vpop.f32.mrb[0].mxu0
    %998 = vdwg.mxu0
    %v1003 = vrot.slane %v952, 4
    %v1004 = vrot.slane %v954, 4
    %v1005 = vrot.slane %v993, 4
    %v1006 = vrot.slane %v995, 4
    %v1011 = vadd.f32 %v149, %v1003
    %v1012 = vadd.f32 %v151, %v1004
    %v1013 = vadd.f32 %v220, %v1005
    %v1014 = vadd.f32 %v222, %v1006
    %v1015 = vxor.u32 %v1011, 2147483648
    %v1016 = vmul.f32 %v1015, 1.442695
    %v1017 = vpow.pop %v1016
    %v1018 = vadd.f32 %v1017, 1.0
    %v1019 = vrcp.pop %v1018
    %v1020 = vmul.f32 1.0, %v1019
    %v1021 = vxor.u32 %v1012, 2147483648
    %v1022 = vmul.f32 %v1021, 1.442695
    %v1023 = vpow.pop %v1022
    %v1024 = vadd.f32 %v1023, 1.0
    %v1025 = vrcp.pop %v1024
    %v1026 = vmul.f32 1.0, %v1025
    %v1027 = vtanh.pop %v1013
    %v1028 = vxor.u32 %v1014, 2147483648
    %v1029 = vmul.f32 %v1028, 1.442695
    %v1030 = vpow.pop %v1029
    %v1031 = vadd.f32 %v1030, 1.0
    %v1032 = vrcp.pop %v1031
    %v1033 = vmul.f32 1.0, %v1032
    %v1035 = vrot.slane %v908, 7
    %v1037 = vmul.f32 %v1026, %v1035
    %v1038 = vmul.f32 %v1020, %v1027
    %v1039 = vadd.f32 %v1037, %v1038
    %v1040 = vtanh.pop %v1039
    %v1041 = vmul.f32 %v1033, %v1040
    %v1042 = vpack.c.bf16 %v1041, %v1041
    %v1044 = vrot.slane %v1042, 2
    %1046 = vmatprep.subr.bf16.mxu0 %v353
    %1047 = vmatpush1.bf16.msra.mxu0 %v352
    %1048 = vmatprep.subr.bf16.mxu0 %v357
    %1049 = vmatpush1.bf16.msra.mxu0 %v356
    %1050 = vmatprep.subr.bf16.mxu0 %v361
    %1051 = vmatpush1.bf16.msra.mxu0 %v360
    %1052 = vmatprep.subr.bf16.mxu0 %v365
    %1053 = vmatpush1.bf16.msra.mxu0 %v364
    %1054 = vmatprep.subr.bf16.mxu0 %v369
    %1055 = vmatpush1.bf16.msra.mxu0 %v368
    %1056 = vmatprep.subr.bf16.mxu0 %v373
    %1057 = vmatpush1.bf16.msra.mxu0 %v372
    %1058 = vmatprep.subr.bf16.mxu0 %v377
    %1059 = vmatpush1.bf16.msra.mxu0 %v376
    %1060 = vmatprep.subr.bf16.mxu0 %v381
    %1061 = vmatpush1.bf16.msra.mxu0 %v380
    %1062 = vmatprep.subr.bf16.mxu0 0
    %1063 = vmatpush1.bf16.msra.mxu0 0
    %1064 = vmatprep.subr.bf16.mxu0 0
    %1065 = vmatpush1.bf16.msra.mxu0 0
    %1066 = vmatprep.subr.bf16.mxu0 0
    %1067 = vmatpush1.bf16.msra.mxu0 0
    %1068 = vmatprep.subr.bf16.mxu0 0
    %1069 = vmatpush1.bf16.msra.mxu0 0
    %1070 = vmatprep.subr.bf16.mxu0 0
    %1071 = vmatpush1.bf16.msra.mxu0 0
    %1072 = vmatprep.subr.bf16.mxu0 0
    %1073 = vmatpush1.bf16.msra.mxu0 0
    %1074 = vmatprep.subr.bf16.mxu0 0
    %1075 = vmatpush1.bf16.msra.mxu0 0
    %1076 = vmatprep.subr.bf16.mxu0 0
    %1077 = vmatpush1.bf16.msra.mxu0 0
    %1078 = vmatprep.mubr.bf16.mxu0 0
    %1079 = vmatmul.mubr.bf16.gmra.mrb[0].mxu0 %v1044
    %v1080 = vpop.f32.mrb[0].mxu0
    %v1081 = vadd.f32 0.0, %v1080
    %v1082 = vpop.f32.mrb[0].mxu0
    %v1083 = vadd.f32 0.0, %v1082
    %v1084 = vpop.f32.mrb[0].mxu0
    %v1085 = vpop.f32.mrb[0].mxu0
    %1086 = vdwg.mxu0
    %1087 = vmatprep.subr.bf16.mxu0 %v355
    %1088 = vmatpush1.bf16.msra.mxu0 %v354
    %1089 = vmatprep.subr.bf16.mxu0 %v359
    %1090 = vmatpush1.bf16.msra.mxu0 %v358
    %1091 = vmatprep.subr.bf16.mxu0 %v363
    %1092 = vmatpush1.bf16.msra.mxu0 %v362
    %1093 = vmatprep.subr.bf16.mxu0 %v367
    %1094 = vmatpush1.bf16.msra.mxu0 %v366
    %1095 = vmatprep.subr.bf16.mxu0 %v371
    %1096 = vmatpush1.bf16.msra.mxu0 %v370
    %1097 = vmatprep.subr.bf16.mxu0 %v375
    %1098 = vmatpush1.bf16.msra.mxu0 %v374
    %1099 = vmatprep.subr.bf16.mxu0 %v379
    %1100 = vmatpush1.bf16.msra.mxu0 %v378
    %1101 = vmatprep.subr.bf16.mxu0 %v383
    %1102 = vmatpush1.bf16.msra.mxu0 %v382
    %1103 = vmatprep.subr.bf16.mxu0 0
    %1104 = vmatpush1.bf16.msra.mxu0 0
    %1105 = vmatprep.subr.bf16.mxu0 0
    %1106 = vmatpush1.bf16.msra.mxu0 0
    %1107 = vmatprep.subr.bf16.mxu0 0
    %1108 = vmatpush1.bf16.msra.mxu0 0
    %1109 = vmatprep.subr.bf16.mxu0 0
    %1110 = vmatpush1.bf16.msra.mxu0 0
    %1111 = vmatprep.subr.bf16.mxu0 0
    %1112 = vmatpush1.bf16.msra.mxu0 0
    %1113 = vmatprep.subr.bf16.mxu0 0
    %1114 = vmatpush1.bf16.msra.mxu0 0
    %1115 = vmatprep.subr.bf16.mxu0 0
    %1116 = vmatpush1.bf16.msra.mxu0 0
    %1117 = vmatprep.subr.bf16.mxu0 0
    %1118 = vmatpush1.bf16.msra.mxu0 0
    %1119 = vmatprep.mubr.bf16.mxu0 0
    %1120 = vmatmul.mubr.bf16.gmra.mrb[0].mxu0 %v1044
    %v1121 = vpop.f32.mrb[0].mxu0
    %v1122 = vadd.f32 0.0, %v1121
    %v1123 = vpop.f32.mrb[0].mxu0
    %v1124 = vadd.f32 0.0, %v1123
    %v1125 = vpop.f32.mrb[0].mxu0
    %v1126 = vpop.f32.mrb[0].mxu0
    %1127 = vdwg.mxu0
    %v1132 = vrot.slane %v1081, 3
    %v1133 = vrot.slane %v1083, 3
    %v1134 = vrot.slane %v1122, 3
    %v1135 = vrot.slane %v1124, 3
    %v1140 = vadd.f32 %v149, %v1132
    %v1141 = vadd.f32 %v151, %v1133
    %v1142 = vadd.f32 %v220, %v1134
    %v1143 = vadd.f32 %v222, %v1135
    %v1144 = vxor.u32 %v1140, 2147483648
    %v1145 = vmul.f32 %v1144, 1.442695
    %v1146 = vpow.pop %v1145
    %v1147 = vadd.f32 %v1146, 1.0
    %v1148 = vrcp.pop %v1147
    %v1149 = vmul.f32 1.0, %v1148
    %v1150 = vxor.u32 %v1141, 2147483648
    %v1151 = vmul.f32 %v1150, 1.442695
    %v1152 = vpow.pop %v1151
    %v1153 = vadd.f32 %v1152, 1.0
    %v1154 = vrcp.pop %v1153
    %v1155 = vmul.f32 1.0, %v1154
    %v1156 = vtanh.pop %v1142
    %v1157 = vxor.u32 %v1143, 2147483648
    %v1158 = vmul.f32 %v1157, 1.442695
    %v1159 = vpow.pop %v1158
    %v1160 = vadd.f32 %v1159, 1.0
    %v1161 = vrcp.pop %v1160
    %v1162 = vmul.f32 1.0, %v1161
    %v1164 = vrot.slane %v1039, 7
    %v1166 = vmul.f32 %v1155, %v1164
    %v1167 = vmul.f32 %v1149, %v1156
    %v1168 = vadd.f32 %v1166, %v1167
    %v1169 = vtanh.pop %v1168
    %v1170 = vmul.f32 %v1162, %v1169
    %v1171 = vpack.c.bf16 %v1170, %v1170
    %v1173 = vshrl.u32 %v1171, 16
    %v1175 = vrot.slane %v1173, 2
    %1177 = vmatprep.subr.bf16.mxu0 %v353
    %1178 = vmatpush1.bf16.msra.mxu0 %v352
    %1179 = vmatprep.subr.bf16.mxu0 %v357
    %1180 = vmatpush1.bf16.msra.mxu0 %v356
    %1181 = vmatprep.subr.bf16.mxu0 %v361
    %1182 = vmatpush1.bf16.msra.mxu0 %v360
    %1183 = vmatprep.subr.bf16.mxu0 %v365
    %1184 = vmatpush1.bf16.msra.mxu0 %v364
    %1185 = vmatprep.subr.bf16.mxu0 %v369
    %1186 = vmatpush1.bf16.msra.mxu0 %v368
    %1187 = vmatprep.subr.bf16.mxu0 %v373
    %1188 = vmatpush1.bf16.msra.mxu0 %v372
    %1189 = vmatprep.subr.bf16.mxu0 %v377
    %1190 = vmatpush1.bf16.msra.mxu0 %v376
    %1191 = vmatprep.subr.bf16.mxu0 %v381
    %1192 = vmatpush1.bf16.msra.mxu0 %v380
    %1193 = vmatprep.subr.bf16.mxu0 0
    %1194 = vmatpush1.bf16.msra.mxu0 0
    %1195 = vmatprep.subr.bf16.mxu0 0
    %1196 = vmatpush1.bf16.msra.mxu0 0
    %1197 = vmatprep.subr.bf16.mxu0 0
    %1198 = vmatpush1.bf16.msra.mxu0 0
    %1199 = vmatprep.subr.bf16.mxu0 0
    %1200 = vmatpush1.bf16.msra.mxu0 0
    %1201 = vmatprep.subr.bf16.mxu0 0
    %1202 = vmatpush1.bf16.msra.mxu0 0
    %1203 = vmatprep.subr.bf16.mxu0 0
    %1204 = vmatpush1.bf16.msra.mxu0 0
    %1205 = vmatprep.subr.bf16.mxu0 0
    %1206 = vmatpush1.bf16.msra.mxu0 0
    %1207 = vmatprep.subr.bf16.mxu0 0
    %1208 = vmatpush1.bf16.msra.mxu0 0
    %1209 = vmatprep.mubr.bf16.mxu0 0
    %1210 = vmatmul.mubr.bf16.gmra.mrb[0].mxu0 %v1175
    %v1211 = vpop.f32.mrb[0].mxu0
    %v1212 = vadd.f32 0.0, %v1211
    %v1213 = vpop.f32.mrb[0].mxu0
    %v1214 = vadd.f32 0.0, %v1213
    %v1215 = vpop.f32.mrb[0].mxu0
    %v1216 = vpop.f32.mrb[0].mxu0
    %1217 = vdwg.mxu0
    %1218 = vmatprep.subr.bf16.mxu0 %v355
    %1219 = vmatpush1.bf16.msra.mxu0 %v354
    %1220 = vmatprep.subr.bf16.mxu0 %v359
    %1221 = vmatpush1.bf16.msra.mxu0 %v358
    %1222 = vmatprep.subr.bf16.mxu0 %v363
    %1223 = vmatpush1.bf16.msra.mxu0 %v362
    %1224 = vmatprep.subr.bf16.mxu0 %v367
    %1225 = vmatpush1.bf16.msra.mxu0 %v366
    %1226 = vmatprep.subr.bf16.mxu0 %v371
    %1227 = vmatpush1.bf16.msra.mxu0 %v370
    %1228 = vmatprep.subr.bf16.mxu0 %v375
    %1229 = vmatpush1.bf16.msra.mxu0 %v374
    %1230 = vmatprep.subr.bf16.mxu0 %v379
    %1231 = vmatpush1.bf16.msra.mxu0 %v378
    %1232 = vmatprep.subr.bf16.mxu0 %v383
    %1233 = vmatpush1.bf16.msra.mxu0 %v382
    %1234 = vmatprep.subr.bf16.mxu0 0
    %1235 = vmatpush1.bf16.msra.mxu0 0
    %1236 = vmatprep.subr.bf16.mxu0 0
    %1237 = vmatpush1.bf16.msra.mxu0 0
    %1238 = vmatprep.subr.bf16.mxu0 0
    %1239 = vmatpush1.bf16.msra.mxu0 0
    %1240 = vmatprep.subr.bf16.mxu0 0
    %1241 = vmatpush1.bf16.msra.mxu0 0
    %1242 = vmatprep.subr.bf16.mxu0 0
    %1243 = vmatpush1.bf16.msra.mxu0 0
    %1244 = vmatprep.subr.bf16.mxu0 0
    %1245 = vmatpush1.bf16.msra.mxu0 0
    %1246 = vmatprep.subr.bf16.mxu0 0
    %1247 = vmatpush1.bf16.msra.mxu0 0
    %1248 = vmatprep.subr.bf16.mxu0 0
    %1249 = vmatpush1.bf16.msra.mxu0 0
    %1250 = vmatprep.mubr.bf16.mxu0 0
    %1251 = vmatmul.mubr.bf16.gmra.mrb[0].mxu0 %v1175
    %v1252 = vpop.f32.mrb[0].mxu0
    %v1253 = vadd.f32 0.0, %v1252
    %v1254 = vpop.f32.mrb[0].mxu0
    %v1255 = vadd.f32 0.0, %v1254
    %v1256 = vpop.f32.mrb[0].mxu0
    %v1257 = vpop.f32.mrb[0].mxu0
    %1258 = vdwg.mxu0
    %v1263 = vrot.slane %v1212, 2
    %v1264 = vrot.slane %v1214, 2
    %v1265 = vrot.slane %v1253, 2
    %v1266 = vrot.slane %v1255, 2
    %v1271 = vadd.f32 %v149, %v1263
    %v1272 = vadd.f32 %v151, %v1264
    %v1273 = vadd.f32 %v220, %v1265
    %v1274 = vadd.f32 %v222, %v1266
    %v1275 = vxor.u32 %v1271, 2147483648
    %v1276 = vmul.f32 %v1275, 1.442695
    %v1277 = vpow.pop %v1276
    %v1278 = vadd.f32 %v1277, 1.0
    %v1279 = vrcp.pop %v1278
    %v1280 = vmul.f32 1.0, %v1279
    %v1281 = vxor.u32 %v1272, 2147483648
    %v1282 = vmul.f32 %v1281, 1.442695
    %v1283 = vpow.pop %v1282
    %v1284 = vadd.f32 %v1283, 1.0
    %v1285 = vrcp.pop %v1284
    %v1286 = vmul.f32 1.0, %v1285
    %v1287 = vtanh.pop %v1273
    %v1288 = vxor.u32 %v1274, 2147483648
    %v1289 = vmul.f32 %v1288, 1.442695
    %v1290 = vpow.pop %v1289
    %v1291 = vadd.f32 %v1290, 1.0
    %v1292 = vrcp.pop %v1291
    %v1293 = vmul.f32 1.0, %v1292
    %v1295 = vrot.slane %v1168, 7
    %v1297 = vmul.f32 %v1286, %v1295
    %v1298 = vmul.f32 %v1280, %v1287
    %v1299 = vadd.f32 %v1297, %v1298
    %v1300 = vtanh.pop %v1299
    %v1301 = vmul.f32 %v1293, %v1300
    %v1302 = vpack.c.bf16 %v1301, %v1301
    %v1304 = vrot.slane %v1302, 3
    %1306 = vmatprep.subr.bf16.mxu0 %v353
    %1307 = vmatpush1.bf16.msra.mxu0 %v352
    %1308 = vmatprep.subr.bf16.mxu0 %v357
    %1309 = vmatpush1.bf16.msra.mxu0 %v356
    %1310 = vmatprep.subr.bf16.mxu0 %v361
    %1311 = vmatpush1.bf16.msra.mxu0 %v360
    %1312 = vmatprep.subr.bf16.mxu0 %v365
    %1313 = vmatpush1.bf16.msra.mxu0 %v364
    %1314 = vmatprep.subr.bf16.mxu0 %v369
    %1315 = vmatpush1.bf16.msra.mxu0 %v368
    %1316 = vmatprep.subr.bf16.mxu0 %v373
    %1317 = vmatpush1.bf16.msra.mxu0 %v372
    %1318 = vmatprep.subr.bf16.mxu0 %v377
    %1319 = vmatpush1.bf16.msra.mxu0 %v376
    %1320 = vmatprep.subr.bf16.mxu0 %v381
    %1321 = vmatpush1.bf16.msra.mxu0 %v380
    %1322 = vmatprep.subr.bf16.mxu0 0
    %1323 = vmatpush1.bf16.msra.mxu0 0
    %1324 = vmatprep.subr.bf16.mxu0 0
    %1325 = vmatpush1.bf16.msra.mxu0 0
    %1326 = vmatprep.subr.bf16.mxu0 0
    %1327 = vmatpush1.bf16.msra.mxu0 0
    %1328 = vmatprep.subr.bf16.mxu0 0
    %1329 = vmatpush1.bf16.msra.mxu0 0
    %1330 = vmatprep.subr.bf16.mxu0 0
    %1331 = vmatpush1.bf16.msra.mxu0 0
    %1332 = vmatprep.subr.bf16.mxu0 0
    %1333 = vmatpush1.bf16.msra.mxu0 0
    %1334 = vmatprep.subr.bf16.mxu0 0
    %1335 = vmatpush1.bf16.msra.mxu0 0
    %1336 = vmatprep.subr.bf16.mxu0 0
    %1337 = vmatpush1.bf16.msra.mxu0 0
    %1338 = vmatprep.mubr.bf16.mxu0 0
    %1339 = vmatmul.mubr.bf16.gmra.mrb[0].mxu0 %v1304
    %v1340 = vpop.f32.mrb[0].mxu0
    %v1341 = vadd.f32 0.0, %v1340
    %v1342 = vpop.f32.mrb[0].mxu0
    %v1343 = vadd.f32 0.0, %v1342
    %v1344 = vpop.f32.mrb[0].mxu0
    %v1345 = vpop.f32.mrb[0].mxu0
    %1346 = vdwg.mxu0
    %1347 = vmatprep.subr.bf16.mxu0 %v355
    %1348 = vmatpush1.bf16.msra.mxu0 %v354
    %1349 = vmatprep.subr.bf16.mxu0 %v359
    %1350 = vmatpush1.bf16.msra.mxu0 %v358
    %1351 = vmatprep.subr.bf16.mxu0 %v363
    %1352 = vmatpush1.bf16.msra.mxu0 %v362
    %1353 = vmatprep.subr.bf16.mxu0 %v367
    %1354 = vmatpush1.bf16.msra.mxu0 %v366
    %1355 = vmatprep.subr.bf16.mxu0 %v371
    %1356 = vmatpush1.bf16.msra.mxu0 %v370
    %1357 = vmatprep.subr.bf16.mxu0 %v375
    %1358 = vmatpush1.bf16.msra.mxu0 %v374
    %1359 = vmatprep.subr.bf16.mxu0 %v379
    %1360 = vmatpush1.bf16.msra.mxu0 %v378
    %1361 = vmatprep.subr.bf16.mxu0 %v383
    %1362 = vmatpush1.bf16.msra.mxu0 %v382
    %1363 = vmatprep.subr.bf16.mxu0 0
    %1364 = vmatpush1.bf16.msra.mxu0 0
    %1365 = vmatprep.subr.bf16.mxu0 0
    %1366 = vmatpush1.bf16.msra.mxu0 0
    %1367 = vmatprep.subr.bf16.mxu0 0
    %1368 = vmatpush1.bf16.msra.mxu0 0
    %1369 = vmatprep.subr.bf16.mxu0 0
    %1370 = vmatpush1.bf16.msra.mxu0 0
    %1371 = vmatprep.subr.bf16.mxu0 0
    %1372 = vmatpush1.bf16.msra.mxu0 0
    %1373 = vmatprep.subr.bf16.mxu0 0
    %1374 = vmatpush1.bf16.msra.mxu0 0
    %1375 = vmatprep.subr.bf16.mxu0 0
    %1376 = vmatpush1.bf16.msra.mxu0 0
    %1377 = vmatprep.subr.bf16.mxu0 0
    %1378 = vmatpush1.bf16.msra.mxu0 0
    %1379 = vmatprep.mubr.bf16.mxu0 0
    %1380 = vmatmul.mubr.bf16.gmra.mrb[0].mxu0 %v1304
    %v1381 = vpop.f32.mrb[0].mxu0
    %v1382 = vadd.f32 0.0, %v1381
    %v1383 = vpop.f32.mrb[0].mxu0
    %v1384 = vadd.f32 0.0, %v1383
    %v1385 = vpop.f32.mrb[0].mxu0
    %v1386 = vpop.f32.mrb[0].mxu0
    %1387 = vdwg.mxu0
    %v1392 = vrot.slane %v1341, 1
    %v1393 = vrot.slane %v1343, 1
    %v1394 = vrot.slane %v1382, 1
    %v1395 = vrot.slane %v1384, 1
    %v1400 = vadd.f32 %v149, %v1392
    %v1401 = vadd.f32 %v151, %v1393
    %v1402 = vadd.f32 %v220, %v1394
    %v1403 = vadd.f32 %v222, %v1395
    %v1404 = vxor.u32 %v1400, 2147483648
    %v1405 = vmul.f32 %v1404, 1.442695
    %v1406 = vpow.pop %v1405
    %v1407 = vadd.f32 %v1406, 1.0
    %v1408 = vrcp.pop %v1407
    %v1409 = vmul.f32 1.0, %v1408
    %v1410 = vxor.u32 %v1401, 2147483648
    %v1411 = vmul.f32 %v1410, 1.442695
    %v1412 = vpow.pop %v1411
    %v1413 = vadd.f32 %v1412, 1.0
    %v1414 = vrcp.pop %v1413
    %v1415 = vmul.f32 1.0, %v1414
    %v1416 = vtanh.pop %v1402
    %v1417 = vxor.u32 %v1403, 2147483648
    %v1418 = vmul.f32 %v1417, 1.442695
    %v1419 = vpow.pop %v1418
    %v1420 = vadd.f32 %v1419, 1.0
    %v1421 = vrcp.pop %v1420
    %v1422 = vmul.f32 1.0, %v1421
    %v1424 = vrot.slane %v1299, 7
    %v1426 = vmul.f32 %v1415, %v1424
    %v1427 = vmul.f32 %v1409, %v1416
    %v1428 = vadd.f32 %v1426, %v1427
    %v1429 = vtanh.pop %v1428
    %v1430 = vmul.f32 %v1422, %v1429
    %v1431 = vld [vmem:[%s4] sm:$0xff]
    %v1432 = vld [vmem:[%s4 + $0x8] sm:$0xff]
    %v1433 = vld [vmem:[%s4 + $0x10] sm:$0xff]
    %v1434 = vld [vmem:[%s4 + $0x18] sm:$0xff]
    %v1435 = vld [vmem:[%s4 + $0x20] sm:$0xff]
    %v1436 = vld [vmem:[%s4 + $0x28] sm:$0xff]
    %v1437 = vld [vmem:[%s4 + $0x30] sm:$0xff]
    %v1438 = vld [vmem:[%s4 + $0x38] sm:$0xff]
    %v1439 = vld [vmem:[%s4 + $0x40] sm:$0xff]
    %v1440 = vld [vmem:[%s4 + $0x48] sm:$0xff]
    %v1441 = vld [vmem:[%s4 + $0x50] sm:$0xff]
    %v1442 = vld [vmem:[%s4 + $0x58] sm:$0xff]
    %v1443 = vld [vmem:[%s4 + $0x60] sm:$0xff]
    %v1444 = vld [vmem:[%s4 + $0x68] sm:$0xff]
    %v1445 = vld [vmem:[%s4 + $0x70] sm:$0xff]
    %v1446 = vld [vmem:[%s4 + $0x78] sm:$0xff]
    %v1447 = vld [vmem:[%s5] sm:$0x1]
    %v1449 = vrot.slane %v1430, 7
    %1451 = vmatprep.subr.mxu0 0.0
    %1452 = vmatpush1.msra.mxu0 %v1431
    %1453 = vmatprep.subr.mxu0 0.0
    %1454 = vmatpush1.msra.mxu0 %v1432
    %1455 = vmatprep.subr.mxu0 0.0
    %1456 = vmatpush1.msra.mxu0 %v1433
    %1457 = vmatprep.subr.mxu0 0.0
    %1458 = vmatpush1.msra.mxu0 %v1434
    %1459 = vmatprep.subr.mxu0 0.0
    %1460 = vmatpush1.msra.mxu0 %v1435
    %1461 = vmatprep.subr.mxu0 0.0
    %1462 = vmatpush1.msra.mxu0 %v1436
    %1463 = vmatprep.subr.mxu0 0.0
    %1464 = vmatpush1.msra.mxu0 %v1437
    %1465 = vmatprep.subr.mxu0 0.0
    %1466 = vmatpush1.msra.mxu0 %v1438
    %1467 = vmatprep.subr.mxu0 0.0
    %1468 = vmatpush1.msra.mxu0 %v1439
    %1469 = vmatprep.subr.mxu0 0.0
    %1470 = vmatpush1.msra.mxu0 %v1440
    %1471 = vmatprep.subr.mxu0 0.0
    %1472 = vmatpush1.msra.mxu0 %v1441
    %1473 = vmatprep.subr.mxu0 0.0
    %1474 = vmatpush1.msra.mxu0 %v1442
    %1475 = vmatprep.subr.mxu0 0.0
    %1476 = vmatpush1.msra.mxu0 %v1443
    %1477 = vmatprep.subr.mxu0 0.0
    %1478 = vmatpush1.msra.mxu0 %v1444
    %1479 = vmatprep.subr.mxu0 0.0
    %1480 = vmatpush1.msra.mxu0 %v1445
    %1481 = vmatprep.subr.mxu0 0.0
    %1482 = vmatpush1.msra.mxu0 %v1446
    %1483 = vmatprep.subr.mxu0 0.0
    %1484 = vmatpush1.msra.mxu0 0.0
    %1485 = vmatprep.subr.mxu0 0.0
    %1486 = vmatpush1.msra.mxu0 0.0
    %1487 = vmatprep.subr.mxu0 0.0
    %1488 = vmatpush1.msra.mxu0 0.0
    %1489 = vmatprep.subr.mxu0 0.0
    %1490 = vmatpush1.msra.mxu0 0.0
    %1491 = vmatprep.subr.mxu0 0.0
    %1492 = vmatpush1.msra.mxu0 0.0
    %1493 = vmatprep.subr.mxu0 0.0
    %1494 = vmatpush1.msra.mxu0 0.0
    %1495 = vmatprep.subr.mxu0 0.0
    %1496 = vmatpush1.msra.mxu0 0.0
    %1497 = vmatprep.subr.mxu0 0.0
    %1498 = vmatpush1.msra.mxu0 0.0
    %1499 = vmatprep.subr.mxu0 0.0
    %1500 = vmatpush1.msra.mxu0 0.0
    %1501 = vmatprep.subr.mxu0 0.0
    %1502 = vmatpush1.msra.mxu0 0.0
    %1503 = vmatprep.subr.mxu0 0.0
    %1504 = vmatpush1.msra.mxu0 0.0
    %1505 = vmatprep.subr.mxu0 0.0
    %1506 = vmatpush1.msra.mxu0 0.0
    %1507 = vmatprep.subr.mxu0 0.0
    %1508 = vmatpush1.msra.mxu0 0.0
    %1509 = vmatprep.subr.mxu0 0.0
    %1510 = vmatpush1.msra.mxu0 0.0
    %1511 = vmatprep.subr.mxu0 0.0
    %1512 = vmatpush1.msra.mxu0 0.0
    %1513 = vmatprep.subr.mxu0 0.0
    %1514 = vmatpush1.msra.mxu0 0.0
    %1515 = vmatprep.mubr.f32.mxu0 0.0
    %1516 = vmatmul.mubr.f32.gmra.mrb[0].mxu0 %v1449
    %v1517 = vpop.f32.mrb[0].mxu0
    %v1518 = vadd.f32 %v1447, %v1517
    %v1519 = vpop.f32.mrb[0].mxu0
    %1520 = vdwg.mxu0
    %vm1521 = vcmask 57344
    %1522 = vst.msk [vmem:[%s6] sm:$0x1] %vm1521, %v1518
    // Predicated region
    $region30: #{_lstm_forward_impl.1} parent=1 // pred_check
      _
    $region31: #{_lstm_forward_impl.1} parent=1 // pred_check_branch
      %1524 = sbr.rel (0) target = $region33
    $region32: #{_lstm_forward_impl.1} parent=1 // pred_region
      _
    $region33: #{_lstm_forward_impl.1} parent=1 // pred_fallthru
      _
    // Predicated region
    $region34: #{_lstm_forward_impl.1} parent=1 // pred_check
      _
    $region35: #{_lstm_forward_impl.1} parent=1 // pred_check_branch
      %1526 = sbr.rel (0) target = $region37
    $region36: #{_lstm_forward_impl.1} parent=1 // pred_region
      _
    $region37: #{_lstm_forward_impl.1} parent=1 // pred_fallthru
      _
    %1527 = vsyncpa [#allocation3], 1

</llo_original>
